<compile_context>
chip_gen: v7x
topology: tpu7x:2x2x1
jax: 0.10.0
libtpu: 0.0.40
codegen_flags: <defaults>
</compile_context>

<pallas_src>
import jax
import jax.numpy as jnp
from jax import lax
from jax.experimental import pallas as pl
from jax.experimental.pallas import tpu as pltpu

NUM_BINS = 80          # self.num_bins
NUM_BINS_PAD = 128     # bins padded to a full vreg lane width
ACT_EMBED_HID = 128    # self.action_embed_hid
OUT_LIN = 128          # self.out_lin
OUT_PAD = 128          # lane-dense output width (sliced to action_dim outside)
NEG_BIG = -1e30        # bias on padded logit lanes (never wins the max)


def _round_up(x, m):
    return ((x + m - 1) // m) * m


def _pick_bm(batch):
    # < 16 rows: single block.  >= 16: at least 2 "parallel" blocks so both
    # v7x TensorCores get work; cap at 256 rows/block (large blocks amortize
    # the ~0.35us per-grid-step overhead on single-TC v5e/v6e).
    if batch < 16:
        return _round_up(max(batch, 1), 8)
    return min(256, _round_up((batch + 1) // 2, 8))


# ----------------------------------------------------------------------------
# Kernel
# ----------------------------------------------------------------------------
def _make_kernel(bm, action_dim, low_act, up_act):
    bin_size = (up_act - low_act) / NUM_BINS
    A = action_dim
    AEH = ACT_EMBED_HID

    def kernel(*refs):
        h_sc = refs[-1]               # VMEM scratch (bm, A*128)
        o_ref = refs[-2]
        x_ref, g_ref, w0_ref, b0_ref, wse_ref, bse_ref, w1_ref, b1_ref = refs[:8]
        if A > 1:
            lww_ref, w2_ref, b2_ref = refs[8], refs[9], refs[10]
        else:
            w2_ref, b2_ref = refs[8], refs[9]
        f32 = jnp.float32

        # ---- state_embed: (Linear -> ReLU) x3 -> Linear (zero-padded dims) --
        h = jnp.maximum(
            jnp.dot(x_ref[...], w0_ref[...], preferred_element_type=f32)
            + b0_ref[...], 0.0)
        for layer in range(3):
            h = jnp.dot(h, wse_ref[layer], preferred_element_type=f32) \
                + bse_ref[layer]
            if layer < 2:
                h = jnp.maximum(h, 0.0)
        state_d = h                                          # (bm, h_pad)

        # ---- one wide MXU matmul for every step's state-conditioned half;
        #      staged in VMEM scratch so vreg pressure stays bounded ---------
        h_sc[...] = jnp.dot(state_d, w1_ref[...],
                            preferred_element_type=f32) + b1_ref[...]

        lane_code = (NUM_BINS_PAD - 1) - lax.broadcasted_iota(
            jnp.int32, (bm, NUM_BINS_PAD), 1)
        out_lane = lax.broadcasted_iota(jnp.int32, (bm, OUT_PAD), 1)

        a_list = []
        for i in range(A):
            # Pre-activation of act_mod[i][0]: state part (+ folded lin_mod
            # bias) from scratch, lin_mod weight folded into lww rows -> pure
            # VPU broadcast-FMAs on the serial chain.
            acc = h_sc[:, i * AEH:(i + 1) * AEH]             # (bm, 128)
            if i > 0:
                lww_i = lww_ref[i - 1]                       # (lw_rows, 128)
                for j in range(i):
                    acc = acc + a_list[j] * lww_i[j:j + 1, :]
            h1 = jnp.maximum(acc, 0.0)
            logits = jnp.dot(h1, w2_ref[i],
                             preferred_element_type=f32) + b2_ref[i]
            z = logits + g_ref[:, i * NUM_BINS_PAD:(i + 1) * NUM_BINS_PAD]
            # Gumbel-max categorical sample, single cross-lane reduce:
            # pack (127 - lane) into the 7 low mantissa bits, one max gives
            # both the winning value and its bin index (padded lanes carry a
            # -1e30 bias so they can never win).
            zi = pltpu.bitcast(z, jnp.int32)
            zp = pltpu.bitcast((zi & (-128)) | lane_code, f32)
            win = jnp.max(zp, axis=-1, keepdims=True)                   # (bm,1)
            lbin = ((NUM_BINS_PAD - 1)
                    - (pltpu.bitcast(win, jnp.int32) & 127)).astype(f32)
            # a_i = (low + frac*bin) + l*bin; the within-bin offset is stashed
            # in padded lane 80 of the noise slab (no separate (bm,1) operand).
            a_base = g_ref[:, i * NUM_BINS_PAD + NUM_BINS:
                           i * NUM_BINS_PAD + NUM_BINS + 1]             # (bm,1)
            a_list.append(a_base + lbin * bin_size)

        # ---- single lane-dense output store ---------------------------------
        out = jnp.zeros((bm, OUT_PAD), f32)
        for i, a_i in enumerate(a_list):
            out = jnp.where(out_lane == i, a_i, out)
        o_ref[...] = out

    return kernel


# ----------------------------------------------------------------------------
# Parameters (torch-style init, (fan_in, fan_out) layout) and kernel packing
# ----------------------------------------------------------------------------
def init_params(key, obs_dim, hidden_dim, action_dim):
    dims = [(2 * obs_dim, hidden_dim), (hidden_dim, hidden_dim),
            (hidden_dim, hidden_dim), (hidden_dim, hidden_dim),
            (hidden_dim, ACT_EMBED_HID), (ACT_EMBED_HID, NUM_BINS)]
    for i in range(1, action_dim):
        dims += [(i, OUT_LIN),
                 (hidden_dim + OUT_LIN, ACT_EMBED_HID),
                 (ACT_EMBED_HID, NUM_BINS)]
    params = []
    keys = jax.random.split(key, len(dims))
    for k, (fi, fo) in zip(keys, dims):
        k1, k2 = jax.random.split(k)
        bound = 1.0 / float(fi) ** 0.5
        params.append(jax.random.uniform(k1, (fi, fo), jnp.float32, -bound, bound))
        params.append(jax.random.uniform(k2, (1, fo), jnp.float32, -bound, bound))
    return params


def _prepare_params(params, in_dim, hidden_dim, action_dim):
    """Pad to lane-dense shapes, fold lin_mod into act_mod, stack per-step weights."""
    in_pad = _round_up(max(in_dim, 1), 128)
    h_pad = _round_up(hidden_dim, 128)
    A = action_dim
    it = iter(params)
    nxt = lambda: next(it)

    def pad2(w, r, c):
        return jnp.pad(w, ((0, r - w.shape[0]), (0, c - w.shape[1])))

    def pad_head(w2, b2):
        w2p = jnp.pad(w2, ((0, 0), (0, NUM_BINS_PAD - NUM_BINS)))
        b2p = jnp.pad(b2, ((0, 0), (0, NUM_BINS_PAD - NUM_BINS)),
                      constant_values=NEG_BIG)
        return w2p, b2p

    # state_embed (layer 0 separate: different fan_in)
    w0, b0 = nxt(), nxt()
    w0 = pad2(w0, in_pad, h_pad)
    b0 = pad2(b0, 1, h_pad)
    wse, bse = [], []
    for _ in range(3):
        w, b = nxt(), nxt()
        wse.append(pad2(w, h_pad, h_pad))
        bse.append(pad2(b, 1, h_pad))
    wse = jnp.stack(wse)                       # (3, h_pad, h_pad)
    bse = jnp.stack(bse)                       # (3, 1, h_pad)

    w1_cols, b1_cols, lww_blocks, w2_all, b2_all = [], [], [], [], []

    # act_mod[0]
    w1, b1, w2, b2 = nxt(), nxt(), nxt(), nxt()
    w1_cols.append(pad2(w1, h_pad, ACT_EMBED_HID))
    b1_cols.append(b1)
    w2p, b2p = pad_head(w2, b2)
    w2_all.append(w2p)
    b2_all.append(b2p)

    lw_rows = _round_up(max(A - 1, 1), 8)
    for i in range(1, A):
        lw, lb = nxt(), nxt()                                   # lin_mod[i-1]
        w1, b1, w2, b2 = nxt(), nxt(), nxt(), nxt()             # act_mod[i]
        w1s, w1l = w1[:hidden_dim, :], w1[hidden_dim:, :]
        w1_cols.append(pad2(w1s, h_pad, ACT_EMBED_HID))
        b1_cols.append(b1 + lb @ w1l)                           # fold lin_mod bias
        lww = lw @ w1l                                          # (i, 128) fold
        lww_blocks.append(jnp.pad(lww, ((0, lw_rows - i), (0, 0))))
        w2p, b2p = pad_head(w2, b2)
        w2_all.append(w2p)
        b2_all.append(b2p)

    w1_all = jnp.concatenate(w1_cols, axis=1)  # (h_pad, A*128)
    b1_all = jnp.concatenate(b1_cols, axis=1)  # (1, A*128)
    w2_all = jnp.stack(w2_all)                 # (A, 128, 128)
    b2_all = jnp.stack(b2_all)                 # (A, 1, 128)

    kparams = [w0, b0, wse, bse, w1_all, b1_all]
    if A > 1:
        kparams.append(jnp.stack(lww_blocks))  # (A-1, lw_rows, 128)
    kparams += [w2_all, b2_all]
    return kparams, in_pad, h_pad


# ----------------------------------------------------------------------------
# Host-side noise (shared by kernel wrapper and reference)
# ----------------------------------------------------------------------------
def sample_noise(key, batch, action_dim, deterministic, low_act, up_act):
    bin_size = (up_act - low_act) / NUM_BINS
    kg, ku = jax.random.split(key)
    gumbel = jax.random.gumbel(kg, (batch, action_dim, NUM_BINS), jnp.float32)
    if deterministic:
        a_base = jnp.full((batch, action_dim),
                          low_act + 0.5 * bin_size, jnp.float32)
    else:
        frac = jax.random.uniform(ku, (batch, action_dim), jnp.float32)
        a_base = low_act + frac * bin_size
    return gumbel, a_base


# ----------------------------------------------------------------------------
# Wrapper
# ----------------------------------------------------------------------------
def ar_inv_model_forward(comb_state, params, key, *, hidden_dim, action_dim,
                         low_act=-1.0, up_act=1.0, deterministic=False):
    assert action_dim <= OUT_PAD
    batch, in_dim = comb_state.shape
    A = action_dim

    bm = _pick_bm(batch)
    batch_pad = _round_up(batch, bm)

    gumbel, a_base = sample_noise(key, batch, A, deterministic, low_act, up_act)
    # Contiguous lane-dense noise slab: per step i, lanes [0,80) of chunk i are
    # gumbel, lane 80 carries the within-bin offset, the rest are zero.
    slab = jnp.zeros((batch, A, NUM_BINS_PAD), jnp.float32)
    slab = slab.at[:, :, :NUM_BINS].set(gumbel)
    slab = slab.at[:, :, NUM_BINS].set(a_base)
    slab = slab.reshape(batch, A * NUM_BINS_PAD)
    slab = jnp.pad(slab, ((0, batch_pad - batch), (0, 0)))

    kparams, in_pad, h_pad = _prepare_params(params, in_dim, hidden_dim, A)
    x = jnp.pad(comb_state.astype(jnp.float32),
                ((0, batch_pad - batch), (0, in_pad - in_dim)))

    in_specs = [
        pl.BlockSpec((bm, in_pad), lambda b: (b, 0)),
        pl.BlockSpec((bm, A * NUM_BINS_PAD), lambda b: (b, 0)),
    ]
    # Weights: full-array VMEM blocks, grid-invariant (resident across batch).
    # TODO(synk): single-buffer these grid-invariant blocks (pipeline_mode=
    # pl.Buffered(1)) to halve resident-weight VMEM on v7x's 64 MiB.
    in_specs += [pl.BlockSpec(p.shape, (lambda b, _n=p.ndim: (0,) * _n))
                 for p in kparams]

    # VMEM budget: double-buffered operands + scratch + slack (clamped to a
    # value valid on every chip generation).
    blk_bytes = (bm * in_pad + bm * A * NUM_BINS_PAD + bm * OUT_PAD) * 4
    wgt_bytes = sum(int(p.size) * 4 for p in kparams)
    scratch_bytes = bm * A * ACT_EMBED_HID * 4
    vmem_need = 2 * (blk_bytes + wgt_bytes) + scratch_bytes + (4 << 20)
    vmem_limit = int(min(max(vmem_need, 32 << 20), 64 << 20))

    out = pl.pallas_call(
        _make_kernel(bm, A, low_act, up_act),
        out_shape=jax.ShapeDtypeStruct((batch_pad, OUT_PAD), jnp.float32),
        grid=(batch_pad // bm,),
        in_specs=in_specs,
        out_specs=pl.BlockSpec((bm, OUT_PAD), lambda b: (b, 0)),
        scratch_shapes=[pltpu.VMEM((bm, A * ACT_EMBED_HID), jnp.float32)],
        compiler_params=pltpu.CompilerParams(
            dimension_semantics=("parallel",),
            vmem_limit_bytes=vmem_limit),
    )(x, slab, *kparams)
    return out[:batch, :action_dim]


# ----------------------------------------------------------------------------
# Pure-JAX reference (same noise, same packed Gumbel-max) for verification
# ----------------------------------------------------------------------------
def _packed_argmax(z):
    zi = jax.lax.bitcast_convert_type(z, jnp.int32)
    codes = (NUM_BINS_PAD - 1) - jnp.arange(z.shape[-1], dtype=jnp.int32)
    zp = jax.lax.bitcast_convert_type((zi & (-128)) | codes, jnp.float32)
    win = jnp.max(zp, axis=-1, keepdims=True)
    lbin = (NUM_BINS_PAD - 1) - (jax.lax.bitcast_convert_type(win, jnp.int32) & 127)
    return lbin.astype(jnp.float32)


def ar_inv_model_reference(comb_state, params, key, *, hidden_dim, action_dim,
                           low_act=-1.0, up_act=1.0, deterministic=False):
    batch = comb_state.shape[0]
    bin_size = (up_act - low_act) / NUM_BINS
    gumbel, a_base = sample_noise(key, batch, action_dim, deterministic,
                                  low_act, up_act)

    it = iter(params)
    nxt = lambda: next(it)
    h = comb_state.astype(jnp.float32)
    for layer in range(4):
        w, b = nxt(), nxt()
        h = h @ w + b
        if layer < 3:
            h = jnp.maximum(h, 0.0)
    state_d = h

    acts = []
    for i in range(action_dim):
        if i == 0:
            inp = state_d
        else:
            lw, lb = nxt(), nxt()
            inp = jnp.concatenate(
                [state_d, jnp.concatenate(acts, axis=1) @ lw + lb], axis=1)
        w1, b1, w2, b2 = nxt(), nxt(), nxt(), nxt()
        logits = jnp.maximum(inp @ w1 + b1, 0.0) @ w2 + b2
        lbin = _packed_argmax(logits + gumbel[:, i])
        acts.append(a_base[:, i:i + 1] + lbin * bin_size)
    return jnp.concatenate(acts, axis=1)


if __name__ == "__main__":
    # Small shapes consistent with the module's forward:
    # comb_state: (batch, 2*observation_dim); output: (batch, action_dim)
    batch = 8
    observation_dim = 4
    hidden_dim = 32
    action_dim = 3
    low_act, up_act = -1.0, 1.0

    root = jax.random.PRNGKey(0)
    k_x, k_p, k_s = jax.random.split(root, 3)
    comb_state = jax.random.normal(k_x, (batch, 2 * observation_dim), jnp.float32)
    params = init_params(k_p, observation_dim, hidden_dim, action_dim)

    kwargs = dict(hidden_dim=hidden_dim, action_dim=action_dim,
                  low_act=low_act, up_act=up_act)

    # Stochastic path: Categorical (Gumbel-max) + Uniform-within-bin.
    out = jax.block_until_ready(
        ar_inv_model_forward(comb_state, params, k_s, deterministic=False, **kwargs))
    ref = ar_inv_model_reference(comb_state, params, k_s, deterministic=False, **kwargs)

    # Deterministic-within-bin path (bin centers; the categorical draw is still
    # sampled, exactly as in the torch forward).
    out_det = jax.block_until_ready(
        ar_inv_model_forward(comb_state, params, k_s, deterministic=True, **kwargs))
    ref_det = ar_inv_model_reference(comb_state, params, k_s, deterministic=True, **kwargs)

    assert out.shape == (batch, action_dim)
    assert out_det.shape == (batch, action_dim)
    assert bool(jnp.all((out >= low_act) & (out <= up_act)))
    assert bool(jnp.all((out_det >= low_act) & (out_det <= up_act)))
    assert bool(jnp.allclose(out, ref, atol=1e-3)), (out, ref)
    assert bool(jnp.allclose(out_det, ref_det, atol=1e-3)), (out_det, ref_det)
    print("KERNEL_OK")
</pallas_src>

<mosaic_0001>
module attributes {stable_mosaic.version = 11 : i64} {
  func.func @kernel(%arg0: i32, %arg1: memref<8x128xf32, #tpu.memory_space<vmem>>, %arg2: memref<8x384xf32, #tpu.memory_space<vmem>>, %arg3: memref<128x128xf32, #tpu.memory_space<vmem>>, %arg4: memref<1x128xf32, #tpu.memory_space<vmem>>, %arg5: memref<3x128x128xf32, #tpu.memory_space<vmem>>, %arg6: memref<3x1x128xf32, #tpu.memory_space<vmem>>, %arg7: memref<128x384xf32, #tpu.memory_space<vmem>>, %arg8: memref<1x384xf32, #tpu.memory_space<vmem>>, %arg9: memref<2x8x128xf32, #tpu.memory_space<vmem>>, %arg10: memref<3x128x128xf32, #tpu.memory_space<vmem>>, %arg11: memref<3x1x128xf32, #tpu.memory_space<vmem>>, %arg12: memref<8x128xf32, #tpu.memory_space<vmem>>, %arg13: memref<8x384xf32, #tpu.memory_space<vmem>>) attributes {dimension_semantics = [#tpu.dimension_semantics<parallel>], iteration_bounds = array<i64: 1>, scalar_prefetch = 0 : i64, scratch_operands = 1 : i64, tpu.core_type = #tpu.core_type<tc>, window_params = [{transform_indices = @transform_0, window_bounds = array<i64: 8, 128>}, {transform_indices = @transform_1, window_bounds = array<i64: 8, 384>}, {pipeline_mode = #tpu.pipeline_mode<synchronous>, transform_indices = @transform_2, window_bounds = array<i64: 128, 128>}, {pipeline_mode = #tpu.pipeline_mode<synchronous>, transform_indices = @transform_3, window_bounds = array<i64: 1, 128>}, {pipeline_mode = #tpu.pipeline_mode<synchronous>, transform_indices = @transform_4, window_bounds = array<i64: 3, 128, 128>}, {pipeline_mode = #tpu.pipeline_mode<synchronous>, transform_indices = @transform_5, window_bounds = array<i64: 3, 1, 128>}, {pipeline_mode = #tpu.pipeline_mode<synchronous>, transform_indices = @transform_6, window_bounds = array<i64: 128, 384>}, {pipeline_mode = #tpu.pipeline_mode<synchronous>, transform_indices = @transform_7, window_bounds = array<i64: 1, 384>}, {pipeline_mode = #tpu.pipeline_mode<synchronous>, transform_indices = @transform_8, window_bounds = array<i64: 2, 8, 128>}, {pipeline_mode = #tpu.pipeline_mode<synchronous>, transform_indices = @transform_9, window_bounds = array<i64: 3, 128, 128>}, {pipeline_mode = #tpu.pipeline_mode<synchronous>, transform_indices = @transform_10, window_bounds = array<i64: 3, 1, 128>}, {transform_indices = @transform_11, window_bounds = array<i64: 8, 128>}]} {
    %c0 = arith.constant 0 : index
    %c0_0 = arith.constant 0 : index
    %0 = vector.load %arg1[%c0, %c0_0] : memref<8x128xf32, #tpu.memory_space<vmem>>, vector<8x128xf32>
    %c0_1 = arith.constant 0 : index
    %c0_2 = arith.constant 0 : index
    %1 = vector.load %arg3[%c0_1, %c0_2] : memref<128x128xf32, #tpu.memory_space<vmem>>, vector<128x128xf32>
    %cst = arith.constant dense<0.000000e+00> : vector<8x128xf32>
    %2 = tpu.matmul %0, %1, %cst {dimension_numbers = #tpu.dot_dimension_numbers<[1], [0], [0], [1], [0, 0, 1, 1], [], []>} : vector<8x128xf32>, vector<128x128xf32>, vector<8x128xf32> -> vector<8x128xf32>
    %c0_3 = arith.constant 0 : index
    %c0_4 = arith.constant 0 : index
    %3 = vector.load %arg4[%c0_3, %c0_4] : memref<1x128xf32, #tpu.memory_space<vmem>>, vector<1x128xf32>
    %4 = vector.broadcast %3 : vector<1x128xf32> to vector<8x128xf32>
    %5 = arith.addf %2, %4 : vector<8x128xf32>
    %cst_5 = arith.constant 0.000000e+00 : f32
    %6 = vector.broadcast %cst_5 : f32 to vector<8x128xf32>
    %7 = arith.maximumf %5, %6 : vector<8x128xf32>
    %c0_6 = arith.constant 0 : index
    %c0_7 = arith.constant 0 : index
    %c0_8 = arith.constant 0 : index
    %8 = vector.load %arg5[%c0_6, %c0_7, %c0_8] : memref<3x128x128xf32, #tpu.memory_space<vmem>>, vector<1x128x128xf32>
    %9 = vector.shape_cast %8 : vector<1x128x128xf32> to vector<128x128xf32>
    %cst_9 = arith.constant dense<0.000000e+00> : vector<8x128xf32>
    %10 = tpu.matmul %7, %9, %cst_9 {dimension_numbers = #tpu.dot_dimension_numbers<[1], [0], [0], [1], [0, 0, 1, 1], [], []>} : vector<8x128xf32>, vector<128x128xf32>, vector<8x128xf32> -> vector<8x128xf32>
    %c0_10 = arith.constant 0 : index
    %c0_11 = arith.constant 0 : index
    %c0_12 = arith.constant 0 : index
    %11 = vector.load %arg6[%c0_10, %c0_11, %c0_12] : memref<3x1x128xf32, #tpu.memory_space<vmem>>, vector<1x1x128xf32>
    %12 = vector.shape_cast %11 : vector<1x1x128xf32> to vector<1x128xf32>
    %13 = vector.broadcast %12 : vector<1x128xf32> to vector<8x128xf32>
    %14 = arith.addf %10, %13 : vector<8x128xf32>
    %cst_13 = arith.constant 0.000000e+00 : f32
    %15 = vector.broadcast %cst_13 : f32 to vector<8x128xf32>
    %16 = arith.maximumf %14, %15 : vector<8x128xf32>
    %c1 = arith.constant 1 : index
    %c0_14 = arith.constant 0 : index
    %c0_15 = arith.constant 0 : index
    %17 = vector.load %arg5[%c1, %c0_14, %c0_15] : memref<3x128x128xf32, #tpu.memory_space<vmem>>, vector<1x128x128xf32>
    %18 = vector.shape_cast %17 : vector<1x128x128xf32> to vector<128x128xf32>
    %cst_16 = arith.constant dense<0.000000e+00> : vector<8x128xf32>
    %19 = tpu.matmul %16, %18, %cst_16 {dimension_numbers = #tpu.dot_dimension_numbers<[1], [0], [0], [1], [0, 0, 1, 1], [], []>} : vector<8x128xf32>, vector<128x128xf32>, vector<8x128xf32> -> vector<8x128xf32>
    %c1_17 = arith.constant 1 : index
    %c0_18 = arith.constant 0 : index
    %c0_19 = arith.constant 0 : index
    %20 = vector.load %arg6[%c1_17, %c0_18, %c0_19] : memref<3x1x128xf32, #tpu.memory_space<vmem>>, vector<1x1x128xf32>
    %21 = vector.shape_cast %20 : vector<1x1x128xf32> to vector<1x128xf32>
    %22 = vector.broadcast %21 : vector<1x128xf32> to vector<8x128xf32>
    %23 = arith.addf %19, %22 : vector<8x128xf32>
    %cst_20 = arith.constant 0.000000e+00 : f32
    %24 = vector.broadcast %cst_20 : f32 to vector<8x128xf32>
    %25 = arith.maximumf %23, %24 : vector<8x128xf32>
    %c2 = arith.constant 2 : index
    %c0_21 = arith.constant 0 : index
    %c0_22 = arith.constant 0 : index
    %26 = vector.load %arg5[%c2, %c0_21, %c0_22] : memref<3x128x128xf32, #tpu.memory_space<vmem>>, vector<1x128x128xf32>
    %27 = vector.shape_cast %26 : vector<1x128x128xf32> to vector<128x128xf32>
    %cst_23 = arith.constant dense<0.000000e+00> : vector<8x128xf32>
    %28 = tpu.matmul %25, %27, %cst_23 {dimension_numbers = #tpu.dot_dimension_numbers<[1], [0], [0], [1], [0, 0, 1, 1], [], []>} : vector<8x128xf32>, vector<128x128xf32>, vector<8x128xf32> -> vector<8x128xf32>
    %c2_24 = arith.constant 2 : index
    %c0_25 = arith.constant 0 : index
    %c0_26 = arith.constant 0 : index
    %29 = vector.load %arg6[%c2_24, %c0_25, %c0_26] : memref<3x1x128xf32, #tpu.memory_space<vmem>>, vector<1x1x128xf32>
    %30 = vector.shape_cast %29 : vector<1x1x128xf32> to vector<1x128xf32>
    %31 = vector.broadcast %30 : vector<1x128xf32> to vector<8x128xf32>
    %32 = arith.addf %28, %31 : vector<8x128xf32>
    %c0_27 = arith.constant 0 : index
    %c0_28 = arith.constant 0 : index
    %33 = vector.load %arg7[%c0_27, %c0_28] : memref<128x384xf32, #tpu.memory_space<vmem>>, vector<128x384xf32>
    %cst_29 = arith.constant dense<0.000000e+00> : vector<8x384xf32>
    %34 = tpu.matmul %32, %33, %cst_29 {dimension_numbers = #tpu.dot_dimension_numbers<[1], [0], [0], [1], [0, 0, 1, 1], [], []>} : vector<8x128xf32>, vector<128x384xf32>, vector<8x384xf32> -> vector<8x384xf32>
    %c0_30 = arith.constant 0 : index
    %c0_31 = arith.constant 0 : index
    %35 = vector.load %arg8[%c0_30, %c0_31] : memref<1x384xf32, #tpu.memory_space<vmem>>, vector<1x384xf32>
    %36 = vector.broadcast %35 : vector<1x384xf32> to vector<8x384xf32>
    %37 = arith.addf %34, %36 : vector<8x384xf32>
    %c0_32 = arith.constant 0 : index
    %c0_33 = arith.constant 0 : index
    %38 = vector.load %arg13[%c0_32, %c0_33] : memref<8x384xf32, #tpu.memory_space<vmem>>, vector<8x384xf32>
    tpu.vector_store %arg13[%c0_32, %c0_33], %37 {strides = array<i32>} : memref<8x384xf32, #tpu.memory_space<vmem>>, vector<8x384xf32>,
    %39 = tpu.iota {dimensions = array<i32: 1>} : vector<8x128xi32>
    %c127_i32 = arith.constant 127 : i32
    %40 = vector.broadcast %c127_i32 : i32 to vector<8x128xi32>
    %41 = arith.subi %40, %39 : vector<8x128xi32>
    %42 = tpu.iota {dimensions = array<i32: 1>} : vector<8x128xi32>
    %c0_34 = arith.constant 0 : index
    %c0_35 = arith.constant 0 : index
    %43 = vector.load %arg13[%c0_34, %c0_35] : memref<8x384xf32, #tpu.memory_space<vmem>>, vector<8x128xf32>
    %cst_36 = arith.constant 0.000000e+00 : f32
    %44 = vector.broadcast %cst_36 : f32 to vector<8x128xf32>
    %45 = arith.maximumf %43, %44 : vector<8x128xf32>
    %c0_37 = arith.constant 0 : index
    %c0_38 = arith.constant 0 : index
    %c0_39 = arith.constant 0 : index
    %46 = vector.load %arg10[%c0_37, %c0_38, %c0_39] : memref<3x128x128xf32, #tpu.memory_space<vmem>>, vector<1x128x128xf32>
    %47 = vector.shape_cast %46 : vector<1x128x128xf32> to vector<128x128xf32>
    %cst_40 = arith.constant dense<0.000000e+00> : vector<8x128xf32>
    %48 = tpu.matmul %45, %47, %cst_40 {dimension_numbers = #tpu.dot_dimension_numbers<[1], [0], [0], [1], [0, 0, 1, 1], [], []>} : vector<8x128xf32>, vector<128x128xf32>, vector<8x128xf32> -> vector<8x128xf32>
    %c0_41 = arith.constant 0 : index
    %c0_42 = arith.constant 0 : index
    %c0_43 = arith.constant 0 : index
    %49 = vector.load %arg11[%c0_41, %c0_42, %c0_43] : memref<3x1x128xf32, #tpu.memory_space<vmem>>, vector<1x1x128xf32>
    %50 = vector.shape_cast %49 : vector<1x1x128xf32> to vector<1x128xf32>
    %51 = vector.broadcast %50 : vector<1x128xf32> to vector<8x128xf32>
    %52 = arith.addf %48, %51 : vector<8x128xf32>
    %c0_44 = arith.constant 0 : index
    %c0_45 = arith.constant 0 : index
    %53 = vector.load %arg2[%c0_44, %c0_45] : memref<8x384xf32, #tpu.memory_space<vmem>>, vector<8x128xf32>
    %54 = arith.addf %52, %53 : vector<8x128xf32>
    %55 = tpu.bitcast %54 : vector<8x128xf32> -> vector<8x128xi32>
    %c-128_i32 = arith.constant -128 : i32
    %56 = vector.broadcast %c-128_i32 : i32 to vector<8x128xi32>
    %57 = arith.andi %55, %56 : vector<8x128xi32>
    %58 = arith.ori %57, %41 : vector<8x128xi32>
    %59 = tpu.bitcast %58 : vector<8x128xi32> -> vector<8x128xf32>
    %cst_46 = arith.constant dense<0xFF800000> : vector<8xf32>
    %60 = vector.multi_reduction <maximumf>, %59, %cst_46 [1] : vector<8x128xf32> to vector<8xf32>
    %61 = vector.shape_cast %60 : vector<8xf32> to vector<8x1xf32>
    %62 = tpu.bitcast %61 : vector<8x1xf32> -> vector<8x1xi32>
    %c127_i32_47 = arith.constant 127 : i32
    %63 = vector.broadcast %c127_i32_47 : i32 to vector<8x1xi32>
    %64 = arith.andi %62, %63 : vector<8x1xi32>
    %c127_i32_48 = arith.constant 127 : i32
    %65 = vector.broadcast %c127_i32_48 : i32 to vector<8x1xi32>
    %66 = arith.subi %65, %64 : vector<8x1xi32>
    %67 = arith.sitofp %66 : vector<8x1xi32> to vector<8x1xf32>
    %c0_49 = arith.constant 0 : index
    %c80 = arith.constant 80 : index
    %68 = vector.load %arg2[%c0_49, %c80] : memref<8x384xf32, #tpu.memory_space<vmem>>, vector<8x1xf32>
    %cst_50 = arith.constant 2.500000e-02 : f32
    %69 = vector.broadcast %cst_50 : f32 to vector<8x1xf32>
    %70 = arith.mulf %67, %69 : vector<8x1xf32>
    %71 = arith.addf %68, %70 : vector<8x1xf32>
    %c0_51 = arith.constant 0 : index
    %c128 = arith.constant 128 : index
    %72 = vector.load %arg13[%c0_51, %c128] : memref<8x384xf32, #tpu.memory_space<vmem>>, vector<8x128xf32>
    %c0_52 = arith.constant 0 : index
    %c0_53 = arith.constant 0 : index
    %c0_54 = arith.constant 0 : index
    %73 = vector.load %arg9[%c0_52, %c0_53, %c0_54] : memref<2x8x128xf32, #tpu.memory_space<vmem>>, vector<1x8x128xf32>
    %74 = vector.shape_cast %73 : vector<1x8x128xf32> to vector<8x128xf32>
    %75 = vector.extract_strided_slice %74 {offsets = [0, 0], sizes = [1, 128], strides = [1, 1]} : vector<8x128xf32> to vector<1x128xf32>
    %76 = vector.broadcast %71 : vector<8x1xf32> to vector<8x128xf32>
    %77 = vector.broadcast %75 : vector<1x128xf32> to vector<8x128xf32>
    %78 = arith.mulf %76, %77 : vector<8x128xf32>
    %79 = arith.addf %72, %78 : vector<8x128xf32>
    %cst_55 = arith.constant 0.000000e+00 : f32
    %80 = vector.broadcast %cst_55 : f32 to vector<8x128xf32>
    %81 = arith.maximumf %79, %80 : vector<8x128xf32>
    %c1_56 = arith.constant 1 : index
    %c0_57 = arith.constant 0 : index
    %c0_58 = arith.constant 0 : index
    %82 = vector.load %arg10[%c1_56, %c0_57, %c0_58] : memref<3x128x128xf32, #tpu.memory_space<vmem>>, vector<1x128x128xf32>
    %83 = vector.shape_cast %82 : vector<1x128x128xf32> to vector<128x128xf32>
    %cst_59 = arith.constant dense<0.000000e+00> : vector<8x128xf32>
    %84 = tpu.matmul %81, %83, %cst_59 {dimension_numbers = #tpu.dot_dimension_numbers<[1], [0], [0], [1], [0, 0, 1, 1], [], []>} : vector<8x128xf32>, vector<128x128xf32>, vector<8x128xf32> -> vector<8x128xf32>
    %c1_60 = arith.constant 1 : index
    %c0_61 = arith.constant 0 : index
    %c0_62 = arith.constant 0 : index
    %85 = vector.load %arg11[%c1_60, %c0_61, %c0_62] : memref<3x1x128xf32, #tpu.memory_space<vmem>>, vector<1x1x128xf32>
    %86 = vector.shape_cast %85 : vector<1x1x128xf32> to vector<1x128xf32>
    %87 = vector.broadcast %86 : vector<1x128xf32> to vector<8x128xf32>
    %88 = arith.addf %84, %87 : vector<8x128xf32>
    %c0_63 = arith.constant 0 : index
    %c128_64 = arith.constant 128 : index
    %89 = vector.load %arg2[%c0_63, %c128_64] : memref<8x384xf32, #tpu.memory_space<vmem>>, vector<8x128xf32>
    %90 = arith.addf %88, %89 : vector<8x128xf32>
    %91 = tpu.bitcast %90 : vector<8x128xf32> -> vector<8x128xi32>
    %c-128_i32_65 = arith.constant -128 : i32
    %92 = vector.broadcast %c-128_i32_65 : i32 to vector<8x128xi32>
    %93 = arith.andi %91, %92 : vector<8x128xi32>
    %94 = arith.ori %93, %41 : vector<8x128xi32>
    %95 = tpu.bitcast %94 : vector<8x128xi32> -> vector<8x128xf32>
    %cst_66 = arith.constant dense<0xFF800000> : vector<8xf32>
    %96 = vector.multi_reduction <maximumf>, %95, %cst_66 [1] : vector<8x128xf32> to vector<8xf32>
    %97 = vector.shape_cast %96 : vector<8xf32> to vector<8x1xf32>
    %98 = tpu.bitcast %97 : vector<8x1xf32> -> vector<8x1xi32>
    %c127_i32_67 = arith.constant 127 : i32
    %99 = vector.broadcast %c127_i32_67 : i32 to vector<8x1xi32>
    %100 = arith.andi %98, %99 : vector<8x1xi32>
    %c127_i32_68 = arith.constant 127 : i32
    %101 = vector.broadcast %c127_i32_68 : i32 to vector<8x1xi32>
    %102 = arith.subi %101, %100 : vector<8x1xi32>
    %103 = arith.sitofp %102 : vector<8x1xi32> to vector<8x1xf32>
    %c0_69 = arith.constant 0 : index
    %c208 = arith.constant 208 : index
    %104 = vector.load %arg2[%c0_69, %c208] : memref<8x384xf32, #tpu.memory_space<vmem>>, vector<8x1xf32>
    %cst_70 = arith.constant 2.500000e-02 : f32
    %105 = vector.broadcast %cst_70 : f32 to vector<8x1xf32>
    %106 = arith.mulf %103, %105 : vector<8x1xf32>
    %107 = arith.addf %104, %106 : vector<8x1xf32>
    %c0_71 = arith.constant 0 : index
    %c256 = arith.constant 256 : index
    %108 = vector.load %arg13[%c0_71, %c256] : memref<8x384xf32, #tpu.memory_space<vmem>>, vector<8x128xf32>
    %c1_72 = arith.constant 1 : index
    %c0_73 = arith.constant 0 : index
    %c0_74 = arith.constant 0 : index
    %109 = vector.load %arg9[%c1_72, %c0_73, %c0_74] : memref<2x8x128xf32, #tpu.memory_space<vmem>>, vector<1x8x128xf32>
    %110 = vector.shape_cast %109 : vector<1x8x128xf32> to vector<8x128xf32>
    %111 = vector.extract_strided_slice %110 {offsets = [0, 0], sizes = [1, 128], strides = [1, 1]} : vector<8x128xf32> to vector<1x128xf32>
    %112 = vector.broadcast %71 : vector<8x1xf32> to vector<8x128xf32>
    %113 = vector.broadcast %111 : vector<1x128xf32> to vector<8x128xf32>
    %114 = arith.mulf %112, %113 : vector<8x128xf32>
    %115 = arith.addf %108, %114 : vector<8x128xf32>
    %116 = vector.extract_strided_slice %110 {offsets = [1, 0], sizes = [1, 128], strides = [1, 1]} : vector<8x128xf32> to vector<1x128xf32>
    %117 = vector.broadcast %107 : vector<8x1xf32> to vector<8x128xf32>
    %118 = vector.broadcast %116 : vector<1x128xf32> to vector<8x128xf32>
    %119 = arith.mulf %117, %118 : vector<8x128xf32>
    %120 = arith.addf %115, %119 : vector<8x128xf32>
    %cst_75 = arith.constant 0.000000e+00 : f32
    %121 = vector.broadcast %cst_75 : f32 to vector<8x128xf32>
    %122 = arith.maximumf %120, %121 : vector<8x128xf32>
    %c2_76 = arith.constant 2 : index
    %c0_77 = arith.constant 0 : index
    %c0_78 = arith.constant 0 : index
    %123 = vector.load %arg10[%c2_76, %c0_77, %c0_78] : memref<3x128x128xf32, #tpu.memory_space<vmem>>, vector<1x128x128xf32>
    %124 = vector.shape_cast %123 : vector<1x128x128xf32> to vector<128x128xf32>
    %cst_79 = arith.constant dense<0.000000e+00> : vector<8x128xf32>
    %125 = tpu.matmul %122, %124, %cst_79 {dimension_numbers = #tpu.dot_dimension_numbers<[1], [0], [0], [1], [0, 0, 1, 1], [], []>} : vector<8x128xf32>, vector<128x128xf32>, vector<8x128xf32> -> vector<8x128xf32>
    %c2_80 = arith.constant 2 : index
    %c0_81 = arith.constant 0 : index
    %c0_82 = arith.constant 0 : index
    %126 = vector.load %arg11[%c2_80, %c0_81, %c0_82] : memref<3x1x128xf32, #tpu.memory_space<vmem>>, vector<1x1x128xf32>
    %127 = vector.shape_cast %126 : vector<1x1x128xf32> to vector<1x128xf32>
    %128 = vector.broadcast %127 : vector<1x128xf32> to vector<8x128xf32>
    %129 = arith.addf %125, %128 : vector<8x128xf32>
    %c0_83 = arith.constant 0 : index
    %c256_84 = arith.constant 256 : index
    %130 = vector.load %arg2[%c0_83, %c256_84] : memref<8x384xf32, #tpu.memory_space<vmem>>, vector<8x128xf32>
    %131 = arith.addf %129, %130 : vector<8x128xf32>
    %132 = tpu.bitcast %131 : vector<8x128xf32> -> vector<8x128xi32>
    %c-128_i32_85 = arith.constant -128 : i32
    %133 = vector.broadcast %c-128_i32_85 : i32 to vector<8x128xi32>
    %134 = arith.andi %132, %133 : vector<8x128xi32>
    %135 = arith.ori %134, %41 : vector<8x128xi32>
    %136 = tpu.bitcast %135 : vector<8x128xi32> -> vector<8x128xf32>
    %cst_86 = arith.constant dense<0xFF800000> : vector<8xf32>
    %137 = vector.multi_reduction <maximumf>, %136, %cst_86 [1] : vector<8x128xf32> to vector<8xf32>
    %138 = vector.shape_cast %137 : vector<8xf32> to vector<8x1xf32>
    %139 = tpu.bitcast %138 : vector<8x1xf32> -> vector<8x1xi32>
    %c127_i32_87 = arith.constant 127 : i32
    %140 = vector.broadcast %c127_i32_87 : i32 to vector<8x1xi32>
    %141 = arith.andi %139, %140 : vector<8x1xi32>
    %c127_i32_88 = arith.constant 127 : i32
    %142 = vector.broadcast %c127_i32_88 : i32 to vector<8x1xi32>
    %143 = arith.subi %142, %141 : vector<8x1xi32>
    %144 = arith.sitofp %143 : vector<8x1xi32> to vector<8x1xf32>
    %c0_89 = arith.constant 0 : index
    %c336 = arith.constant 336 : index
    %145 = vector.load %arg2[%c0_89, %c336] : memref<8x384xf32, #tpu.memory_space<vmem>>, vector<8x1xf32>
    %cst_90 = arith.constant 2.500000e-02 : f32
    %146 = vector.broadcast %cst_90 : f32 to vector<8x1xf32>
    %147 = arith.mulf %144, %146 : vector<8x1xf32>
    %148 = arith.addf %145, %147 : vector<8x1xf32>
    %cst_91 = arith.constant 0.000000e+00 : f32
    %149 = vector.broadcast %cst_91 : f32 to vector<8x128xf32>
    %c0_i32 = arith.constant 0 : i32
    %150 = vector.broadcast %c0_i32 : i32 to vector<8x128xi32>
    %151 = arith.cmpi eq, %42, %150 : vector<8x128xi32>
    %152 = vector.shape_cast %71 : vector<8x1xf32> to vector<8x1xf32>
    %153 = vector.broadcast %152 : vector<8x1xf32> to vector<8x128xf32>
    %154 = arith.select %151, %153, %149 : vector<8x128xi1>, vector<8x128xf32>
    %c1_i32 = arith.constant 1 : i32
    %155 = vector.broadcast %c1_i32 : i32 to vector<8x128xi32>
    %156 = arith.cmpi eq, %42, %155 : vector<8x128xi32>
    %157 = vector.shape_cast %107 : vector<8x1xf32> to vector<8x1xf32>
    %158 = vector.broadcast %157 : vector<8x1xf32> to vector<8x128xf32>
    %159 = arith.select %156, %158, %154 : vector<8x128xi1>, vector<8x128xf32>
    %c2_i32 = arith.constant 2 : i32
    %160 = vector.broadcast %c2_i32 : i32 to vector<8x128xi32>
    %161 = arith.cmpi eq, %42, %160 : vector<8x128xi32>
    %162 = vector.shape_cast %148 : vector<8x1xf32> to vector<8x1xf32>
    %163 = vector.broadcast %162 : vector<8x1xf32> to vector<8x128xf32>
    %164 = arith.select %161, %163, %159 : vector<8x128xi1>, vector<8x128xf32>
    %c0_92 = arith.constant 0 : index
    %c0_93 = arith.constant 0 : index
    %165 = vector.load %arg12[%c0_92, %c0_93] : memref<8x128xf32, #tpu.memory_space<vmem>>, vector<8x128xf32>
    tpu.vector_store %arg12[%c0_92, %c0_93], %164 {strides = array<i32>} : memref<8x128xf32, #tpu.memory_space<vmem>>, vector<8x128xf32>,
    return
  }
  func.func @transform_0(%arg0: i32) -> (i32, i32) {
    %c0_i32 = arith.constant 0 : i32
    %c0_i32_0 = arith.constant 0 : i32
    return %arg0, %c0_i32 : i32, i32
  }
  func.func @transform_1(%arg0: i32) -> (i32, i32) {
    %c0_i32 = arith.constant 0 : i32
    %c0_i32_0 = arith.constant 0 : i32
    return %arg0, %c0_i32 : i32, i32
  }
  func.func @transform_2(%arg0: i32) -> (i32, i32) {
    %c0_i32 = arith.constant 0 : i32
    %c0_i32_0 = arith.constant 0 : i32
    %c0_i32_1 = arith.constant 0 : i32
    return %c0_i32, %c0_i32_0 : i32, i32
  }
  func.func @transform_3(%arg0: i32) -> (i32, i32) {
    %c0_i32 = arith.constant 0 : i32
    %c0_i32_0 = arith.constant 0 : i32
    %c0_i32_1 = arith.constant 0 : i32
    return %c0_i32, %c0_i32_0 : i32, i32
  }
  func.func @transform_4(%arg0: i32) -> (i32, i32, i32) {
    %c0_i32 = arith.constant 0 : i32
    %c0_i32_0 = arith.constant 0 : i32
    %c0_i32_1 = arith.constant 0 : i32
    %c0_i32_2 = arith.constant 0 : i32
    return %c0_i32, %c0_i32_0, %c0_i32_1 : i32, i32, i32
  }
  func.func @transform_5(%arg0: i32) -> (i32, i32, i32) {
    %c0_i32 = arith.constant 0 : i32
    %c0_i32_0 = arith.constant 0 : i32
    %c0_i32_1 = arith.constant 0 : i32
    %c0_i32_2 = arith.constant 0 : i32
    return %c0_i32, %c0_i32_0, %c0_i32_1 : i32, i32, i32
  }
  func.func @transform_6(%arg0: i32) -> (i32, i32) {
    %c0_i32 = arith.constant 0 : i32
    %c0_i32_0 = arith.constant 0 : i32
    %c0_i32_1 = arith.constant 0 : i32
    return %c0_i32, %c0_i32_0 : i32, i32
  }
  func.func @transform_7(%arg0: i32) -> (i32, i32) {
    %c0_i32 = arith.constant 0 : i32
    %c0_i32_0 = arith.constant 0 : i32
    %c0_i32_1 = arith.constant 0 : i32
    return %c0_i32, %c0_i32_0 : i32, i32
  }
  func.func @transform_8(%arg0: i32) -> (i32, i32, i32) {
    %c0_i32 = arith.constant 0 : i32
    %c0_i32_0 = arith.constant 0 : i32
    %c0_i32_1 = arith.constant 0 : i32
    %c0_i32_2 = arith.constant 0 : i32
    return %c0_i32, %c0_i32_0, %c0_i32_1 : i32, i32, i32
  }
  func.func @transform_9(%arg0: i32) -> (i32, i32, i32) {
    %c0_i32 = arith.constant 0 : i32
    %c0_i32_0 = arith.constant 0 : i32
    %c0_i32_1 = arith.constant 0 : i32
    %c0_i32_2 = arith.constant 0 : i32
    return %c0_i32, %c0_i32_0, %c0_i32_1 : i32, i32, i32
  }
  func.func @transform_10(%arg0: i32) -> (i32, i32, i32) {
    %c0_i32 = arith.constant 0 : i32
    %c0_i32_0 = arith.constant 0 : i32
    %c0_i32_1 = arith.constant 0 : i32
    %c0_i32_2 = arith.constant 0 : i32
    return %c0_i32, %c0_i32_0, %c0_i32_1 : i32, i32, i32
  }
  func.func @transform_11(%arg0: i32) -> (i32, i32) {
    %c0_i32 = arith.constant 0 : i32
    %c0_i32_0 = arith.constant 0 : i32
    return %arg0, %c0_i32 : i32, i32
  }
}

</mosaic_0001>

<llo_original>
// kernel: tpu_custom_call.1
$region0: #{tpu_custom_call.1}
  #allocation0 [shape = 'u32[]', space=smem, size = 0x4, offset = 0x4, fixed_abs, tag = 'smem constant byte address 0x4 - core index']
  #allocation1 [shape = 'u32[144,128]{1,0:T(1,128)}', space=vmem, size = 0x12000, scoped, tag = 'internal scratch']
  #allocation2 [shape = 'f32[8,384]{1,0:T(8,128)}', space=vmem, size = 0x3000, scoped, tag = 'scratch operand']
  %s0 = inlined_call_operand.hbm [shape: f32[8,128], index: 0, kind: input, shape index: {}]
  %s1 = inlined_call_operand.hbm [shape: f32[8,384], index: 1, kind: input, shape index: {}]
  %s2 = inlined_call_operand.hbm [shape: f32[128,128], index: 2, kind: input, shape index: {}]
  %s3 = inlined_call_operand.vmem [shape: f32[1,128], index: 3, kind: input, shape index: {}]
  %s4 = inlined_call_operand.hbm [shape: f32[3,128,128], index: 4, kind: input, shape index: {}]
  %s5 = inlined_call_operand.vmem [shape: f32[3,1,128], index: 5, kind: input, shape index: {}]
  %s6 = inlined_call_operand.hbm [shape: f32[128,384], index: 6, kind: input, shape index: {}]
  %s7 = inlined_call_operand.vmem [shape: f32[1,384], index: 7, kind: input, shape index: {}]
  %s8 = inlined_call_operand.vmem [shape: f32[2,8,128], index: 8, kind: input, shape index: {}]
  %s9 = inlined_call_operand.hbm [shape: f32[3,128,128], index: 9, kind: input, shape index: {}]
  %s10 = inlined_call_operand.vmem [shape: f32[3,1,128], index: 10, kind: input, shape index: {}]
  %s11 = inlined_call_operand.hbm [shape: f32[8,128], index: 11, kind: output, shape index: {}]
  %s12 = sld [smem:[#allocation0]]
  $region78: #{tpu_custom_call.1} parent=0
    _
  %s14 = ssub.s32 1, %s12
  %s15 = scalar_select 0, %s14, %s12
  $region1: #{tpu_custom_call.1} parent=0
    #allocation3 [shape = 'u8[4096]{0}', space=vmem, size = 0x1000, scoped, tag = 'input window, operand 0, single buffered']
    #allocation4 [shape = 's32[1]{0}', space=sflag, size = 0x4, scoped, tag = 'scoped memory for tpu_custom_call.1']
    #allocation5 [shape = 's32[1]{0}', space=sflag, size = 0x4, scoped, tag = 'scoped memory for tpu_custom_call.1']
    #allocation6 [shape = 'u8[12288]{0}', space=vmem, size = 0x3000, scoped, tag = 'input window, operand 1, single buffered']
    #allocation7 [shape = 's32[1]{0}', space=sflag, size = 0x4, scoped, tag = 'scoped memory for tpu_custom_call.1']
    #allocation8 [shape = 'u8[65536]{0}', space=vmem, size = 0x10000, scoped, tag = 'input window, operand 2, single buffered']
    #allocation9 [shape = 'u8[196608]{0}', space=vmem, size = 0x30000, scoped, tag = 'input window, operand 4, single buffered']
    #allocation10 [shape = 's32[1]{0}', space=sflag, size = 0x4, scoped, tag = 'scoped memory for tpu_custom_call.1']
    #allocation11 [shape = 'u8[196608]{0}', space=vmem, size = 0x30000, scoped, tag = 'input window, operand 6, single buffered']
    #allocation12 [shape = 'u8[196608]{0}', space=vmem, size = 0x30000, scoped, tag = 'input window, operand 9, single buffered']
    #allocation13 [shape = 's32[1]{0}', space=sflag, size = 0x4, scoped, tag = 'scoped memory for tpu_custom_call.1']
    #allocation14 [shape = 'u8[4096]{0}', space=vmem, size = 0x1000, scoped, tag = 'output window, operand 0, single buffered']
    %16 = vsyncpa [#allocation4], 0
    %17 = vsyncpa [#allocation7], 0
    %18 = vsyncpa [#allocation10], 0
    %19 = vsyncpa [#allocation13], 0
    %20 = vsyncpa [#allocation5], 0
    // Predicated region
    $region2: #{tpu_custom_call.1} parent=1 // pred_check
      _
    $region3: #{tpu_custom_call.1} parent=1 // pred_check_branch
      %22 = sbr.rel (0) target = $region5
    $region4: #{tpu_custom_call.1} parent=1 // pred_region
      %s24 = ssub.s32 128, 128
      %25 = vsyncadd [#allocation4], %s24
      %s27 = sshll.u32 [#allocation3], 4
      %s28 = int_to_ptr.vmem [resolvable:$true] %s27
      %30 = dma.hbm_to_vmem [thread:$0]  %s0, 128, %s28, [#allocation4]
    $region5: #{tpu_custom_call.1} parent=1 // pred_fallthru
      _
    // Predicated region
    $region6: #{tpu_custom_call.1} parent=1 // pred_check
      _
    $region7: #{tpu_custom_call.1} parent=1 // pred_check_branch
      %32 = sbr.rel (0) target = $region9
    $region8: #{tpu_custom_call.1} parent=1 // pred_region
      %s34 = ssub.s32 384, 384
      %35 = vsyncadd [#allocation7], %s34
      %s37 = sshll.u32 [#allocation6], 4
      %s38 = int_to_ptr.vmem [resolvable:$true] %s37
      %40 = dma.hbm_to_vmem [thread:$0]  %s1, 384, %s38, [#allocation7]
    $region9: #{tpu_custom_call.1} parent=1 // pred_fallthru
      _
    // Predicated region
    $region10: #{tpu_custom_call.1} parent=1 // pred_check
      _
    $region11: #{tpu_custom_call.1} parent=1 // pred_check_branch
      %42 = sbr.rel (0) target = $region13
    $region12: #{tpu_custom_call.1} parent=1 // pred_region
      %s44 = ssub.s32 2048, 2048
      %45 = vsyncadd [#allocation7], %s44
      %s46 = sshll.u32 [#allocation8], 4
      %s47 = int_to_ptr.vmem [resolvable:$true] %s46
      %52 = dma.hbm_to_vmem [thread:$0]  %s2, 2048, %s47, [#allocation7], 128, 128, 8
    $region13: #{tpu_custom_call.1} parent=1 // pred_fallthru
      _
    // Predicated region
    $region14: #{tpu_custom_call.1} parent=1 // pred_check
      _
    $region15: #{tpu_custom_call.1} parent=1 // pred_check_branch
      %54 = sbr.rel (0) target = $region17
    $region16: #{tpu_custom_call.1} parent=1 // pred_region
      _
    $region17: #{tpu_custom_call.1} parent=1 // pred_fallthru
      _
    // Predicated region
    $region18: #{tpu_custom_call.1} parent=1 // pred_check
      _
    $region19: #{tpu_custom_call.1} parent=1 // pred_check_branch
      %56 = sbr.rel (0) target = $region21
    $region20: #{tpu_custom_call.1} parent=1 // pred_region
      %s58 = ssub.s32 6144, 6144
      %59 = vsyncadd [#allocation10], %s58
      %s60 = sshll.u32 [#allocation9], 4
      %s61 = int_to_ptr.vmem [resolvable:$true] %s60
      %66 = dma.hbm_to_vmem [thread:$0]  %s4, 6144, %s61, [#allocation10], 128, 128, 8
    $region21: #{tpu_custom_call.1} parent=1 // pred_fallthru
      _
    // Predicated region
    $region22: #{tpu_custom_call.1} parent=1 // pred_check
      _
    $region23: #{tpu_custom_call.1} parent=1 // pred_check_branch
      %68 = sbr.rel (0) target = $region25
    $region24: #{tpu_custom_call.1} parent=1 // pred_region
      _
    $region25: #{tpu_custom_call.1} parent=1 // pred_fallthru
      _
    // Predicated region
    $region26: #{tpu_custom_call.1} parent=1 // pred_check
      _
    $region27: #{tpu_custom_call.1} parent=1 // pred_check_branch
      %70 = sbr.rel (0) target = $region29
    $region28: #{tpu_custom_call.1} parent=1 // pred_region
      %s72 = ssub.s32 6144, 6144
      %73 = vsyncadd [#allocation10], %s72
      %s74 = sshll.u32 [#allocation11], 4
      %s75 = int_to_ptr.vmem [resolvable:$true] %s74
      %80 = dma.hbm_to_vmem [thread:$0]  %s6, 6144, %s75, [#allocation10], 384, 384, 24
    $region29: #{tpu_custom_call.1} parent=1 // pred_fallthru
      _
    // Predicated region
    $region30: #{tpu_custom_call.1} parent=1 // pred_check
      _
    $region31: #{tpu_custom_call.1} parent=1 // pred_check_branch
      %82 = sbr.rel (0) target = $region33
    $region32: #{tpu_custom_call.1} parent=1 // pred_region
      _
    $region33: #{tpu_custom_call.1} parent=1 // pred_fallthru
      _
    // Predicated region
    $region34: #{tpu_custom_call.1} parent=1 // pred_check
      _
    $region35: #{tpu_custom_call.1} parent=1 // pred_check_branch
      %84 = sbr.rel (0) target = $region37
    $region36: #{tpu_custom_call.1} parent=1 // pred_region
      _
    $region37: #{tpu_custom_call.1} parent=1 // pred_fallthru
      _
    // Predicated region
    $region38: #{tpu_custom_call.1} parent=1 // pred_check
      _
    $region39: #{tpu_custom_call.1} parent=1 // pred_check_branch
      %86 = sbr.rel (0) target = $region41
    $region40: #{tpu_custom_call.1} parent=1 // pred_region
      %s88 = ssub.s32 6144, 6144
      %89 = vsyncadd [#allocation13], %s88
      %s90 = sshll.u32 [#allocation12], 4
      %s91 = int_to_ptr.vmem [resolvable:$true] %s90
      %96 = dma.hbm_to_vmem [thread:$0]  %s9, 6144, %s91, [#allocation13], 128, 128, 8
    $region41: #{tpu_custom_call.1} parent=1 // pred_fallthru
      _
    // Predicated region
    $region42: #{tpu_custom_call.1} parent=1 // pred_check
      _
    $region43: #{tpu_custom_call.1} parent=1 // pred_check_branch
      %98 = sbr.rel (0) target = $region45
    $region44: #{tpu_custom_call.1} parent=1 // pred_region
      _
    $region45: #{tpu_custom_call.1} parent=1 // pred_fallthru
      _
    // Predicated region
    $region46: #{tpu_custom_call.1} parent=1 // pred_check
      _
    $region47: #{tpu_custom_call.1} parent=1 // pred_check_branch
      %100 = sbr.rel (0) target = $region49
    $region48: #{tpu_custom_call.1} parent=1 // pred_region
      %101 = dma.done [#allocation4], 128
    $region49: #{tpu_custom_call.1} parent=1 // pred_fallthru
      _
    // Predicated region
    $region50: #{tpu_custom_call.1} parent=1 // pred_check
      _
    $region51: #{tpu_custom_call.1} parent=1 // pred_check_branch
      %103 = sbr.rel (0) target = $region53
    $region52: #{tpu_custom_call.1} parent=1 // pred_region
      %104 = dma.done [#allocation7], 384
    $region53: #{tpu_custom_call.1} parent=1 // pred_fallthru
      _
    // Predicated region
    $region54: #{tpu_custom_call.1} parent=1 // pred_check
      _
    $region55: #{tpu_custom_call.1} parent=1 // pred_check_branch
      %106 = sbr.rel (0) target = $region57
    $region56: #{tpu_custom_call.1} parent=1 // pred_region
      %107 = dma.done [#allocation7], 2048
    $region57: #{tpu_custom_call.1} parent=1 // pred_fallthru
      _
    // Predicated region
    $region58: #{tpu_custom_call.1} parent=1 // pred_check
      _
    $region59: #{tpu_custom_call.1} parent=1 // pred_check_branch
      %109 = sbr.rel (0) target = $region61
    $region60: #{tpu_custom_call.1} parent=1 // pred_region
      %110 = dma.done [#allocation10], 6144
    $region61: #{tpu_custom_call.1} parent=1 // pred_fallthru
      _
    // Predicated region
    $region62: #{tpu_custom_call.1} parent=1 // pred_check
      _
    $region63: #{tpu_custom_call.1} parent=1 // pred_check_branch
      %112 = sbr.rel (0) target = $region65
    $region64: #{tpu_custom_call.1} parent=1 // pred_region
      %113 = dma.done [#allocation10], 6144
    $region65: #{tpu_custom_call.1} parent=1 // pred_fallthru
      _
    // Predicated region
    $region66: #{tpu_custom_call.1} parent=1 // pred_check
      _
    $region67: #{tpu_custom_call.1} parent=1 // pred_check_branch
      %115 = sbr.rel (0) target = $region69
    $region68: #{tpu_custom_call.1} parent=1 // pred_region
      %116 = dma.done [#allocation13], 6144
    $region69: #{tpu_custom_call.1} parent=1 // pred_fallthru
      _
    %v117 = vld [vmem:[#allocation3] sm:$0xff]
    %v118 = vld [vmem:[#allocation8] sm:$0xff]
    %v119 = vld [vmem:[#allocation8 + $0x8] sm:$0xff]
    %v120 = vld [vmem:[#allocation8 + $0x10] sm:$0xff]
    %v121 = vld [vmem:[#allocation8 + $0x18] sm:$0xff]
    %v122 = vld [vmem:[#allocation8 + $0x20] sm:$0xff]
    %v123 = vld [vmem:[#allocation8 + $0x28] sm:$0xff]
    %v124 = vld [vmem:[#allocation8 + $0x30] sm:$0xff]
    %v125 = vld [vmem:[#allocation8 + $0x38] sm:$0xff]
    %v126 = vld [vmem:[#allocation8 + $0x40] sm:$0xff]
    %v127 = vld [vmem:[#allocation8 + $0x48] sm:$0xff]
    %v128 = vld [vmem:[#allocation8 + $0x50] sm:$0xff]
    %v129 = vld [vmem:[#allocation8 + $0x58] sm:$0xff]
    %v130 = vld [vmem:[#allocation8 + $0x60] sm:$0xff]
    %v131 = vld [vmem:[#allocation8 + $0x68] sm:$0xff]
    %v132 = vld [vmem:[#allocation8 + $0x70] sm:$0xff]
    %v133 = vld [vmem:[#allocation8 + $0x78] sm:$0xff]
    %v134 = vld [vmem:[%s3] sm:$0x1]
    %v136 = vlaneseq
    %v137 = vshrl.u32 %v136, 7
    %v138 = vsub.s32 0, %v137
    %v139 = vrot.slane %v134, %v138
    %141 = vmatprep.subr.mxu0 0.0
    %142 = vmatpush1.msra.mxu0 %v118
    %143 = vmatprep.subr.mxu0 0.0
    %144 = vmatpush1.msra.mxu0 %v119
    %145 = vmatprep.subr.mxu0 0.0
    %146 = vmatpush1.msra.mxu0 %v120
    %147 = vmatprep.subr.mxu0 0.0
    %148 = vmatpush1.msra.mxu0 %v121
    %149 = vmatprep.subr.mxu0 0.0
    %150 = vmatpush1.msra.mxu0 %v122
    %151 = vmatprep.subr.mxu0 0.0
    %152 = vmatpush1.msra.mxu0 %v123
    %153 = vmatprep.subr.mxu0 0.0
    %154 = vmatpush1.msra.mxu0 %v124
    %155 = vmatprep.subr.mxu0 0.0
    %156 = vmatpush1.msra.mxu0 %v125
    %157 = vmatprep.subr.mxu0 0.0
    %158 = vmatpush1.msra.mxu0 %v126
    %159 = vmatprep.subr.mxu0 0.0
    %160 = vmatpush1.msra.mxu0 %v127
    %161 = vmatprep.subr.mxu0 0.0
    %162 = vmatpush1.msra.mxu0 %v128
    %163 = vmatprep.subr.mxu0 0.0
    %164 = vmatpush1.msra.mxu0 %v129
    %165 = vmatprep.subr.mxu0 0.0
    %166 = vmatpush1.msra.mxu0 %v130
    %167 = vmatprep.subr.mxu0 0.0
    %168 = vmatpush1.msra.mxu0 %v131
    %169 = vmatprep.subr.mxu0 0.0
    %170 = vmatpush1.msra.mxu0 %v132
    %171 = vmatprep.subr.mxu0 0.0
    %172 = vmatpush1.msra.mxu0 %v133
    %173 = vmatprep.subr.mxu0 0.0
    %174 = vmatpush1.msra.mxu0 0.0
    %175 = vmatprep.subr.mxu0 0.0
    %176 = vmatpush1.msra.mxu0 0.0
    %177 = vmatprep.subr.mxu0 0.0
    %178 = vmatpush1.msra.mxu0 0.0
    %179 = vmatprep.subr.mxu0 0.0
    %180 = vmatpush1.msra.mxu0 0.0
    %181 = vmatprep.subr.mxu0 0.0
    %182 = vmatpush1.msra.mxu0 0.0
    %183 = vmatprep.subr.mxu0 0.0
    %184 = vmatpush1.msra.mxu0 0.0
    %185 = vmatprep.subr.mxu0 0.0
    %186 = vmatpush1.msra.mxu0 0.0
    %187 = vmatprep.subr.mxu0 0.0
    %188 = vmatpush1.msra.mxu0 0.0
    %189 = vmatprep.subr.mxu0 0.0
    %190 = vmatpush1.msra.mxu0 0.0
    %191 = vmatprep.subr.mxu0 0.0
    %192 = vmatpush1.msra.mxu0 0.0
    %193 = vmatprep.subr.mxu0 0.0
    %194 = vmatpush1.msra.mxu0 0.0
    %195 = vmatprep.subr.mxu0 0.0
    %196 = vmatpush1.msra.mxu0 0.0
    %197 = vmatprep.subr.mxu0 0.0
    %198 = vmatpush1.msra.mxu0 0.0
    %199 = vmatprep.subr.mxu0 0.0
    %200 = vmatpush1.msra.mxu0 0.0
    %201 = vmatprep.subr.mxu0 0.0
    %202 = vmatpush1.msra.mxu0 0.0
    %203 = vmatprep.subr.mxu0 0.0
    %204 = vmatpush1.msra.mxu0 0.0
    %205 = vmatprep.mubr.f32.mxu0 0.0
    %206 = vmatmul.mubr.f32.gmra.mrb[0].mxu0 %v117
    %v207 = vpop.f32.mrb[0].mxu0
    %v208 = vadd.f32 %v139, %v207
    %v209 = vpop.f32.mrb[0].mxu0
    %210 = vdwg.mxu0
    %v211 = vmax.f32 %v208, 0.0
    %v212 = vld [vmem:[#allocation9] sm:$0xff]
    %v213 = vld [vmem:[#allocation9 + $0x8] sm:$0xff]
    %v214 = vld [vmem:[#allocation9 + $0x10] sm:$0xff]
    %v215 = vld [vmem:[#allocation9 + $0x18] sm:$0xff]
    %v216 = vld [vmem:[#allocation9 + $0x20] sm:$0xff]
    %v217 = vld [vmem:[#allocation9 + $0x28] sm:$0xff]
    %v218 = vld [vmem:[#allocation9 + $0x30] sm:$0xff]
    %v219 = vld [vmem:[#allocation9 + $0x38] sm:$0xff]
    %v220 = vld [vmem:[#allocation9 + $0x40] sm:$0xff]
    %v221 = vld [vmem:[#allocation9 + $0x48] sm:$0xff]
    %v222 = vld [vmem:[#allocation9 + $0x50] sm:$0xff]
    %v223 = vld [vmem:[#allocation9 + $0x58] sm:$0xff]
    %v224 = vld [vmem:[#allocation9 + $0x60] sm:$0xff]
    %v225 = vld [vmem:[#allocation9 + $0x68] sm:$0xff]
    %v226 = vld [vmem:[#allocation9 + $0x70] sm:$0xff]
    %v227 = vld [vmem:[#allocation9 + $0x78] sm:$0xff]
    %v228 = vld [vmem:[%s5] sm:$0x1]
    %v230 = vlaneseq
    %v231 = vshrl.u32 %v230, 7
    %v232 = vsub.s32 0, %v231
    %v233 = vrot.slane %v228, %v232
    %235 = vmatprep.subr.mxu0 0.0
    %236 = vmatpush1.msra.mxu0 %v212
    %237 = vmatprep.subr.mxu0 0.0
    %238 = vmatpush1.msra.mxu0 %v213
    %239 = vmatprep.subr.mxu0 0.0
    %240 = vmatpush1.msra.mxu0 %v214
    %241 = vmatprep.subr.mxu0 0.0
    %242 = vmatpush1.msra.mxu0 %v215
    %243 = vmatprep.subr.mxu0 0.0
    %244 = vmatpush1.msra.mxu0 %v216
    %245 = vmatprep.subr.mxu0 0.0
    %246 = vmatpush1.msra.mxu0 %v217
    %247 = vmatprep.subr.mxu0 0.0
    %248 = vmatpush1.msra.mxu0 %v218
    %249 = vmatprep.subr.mxu0 0.0
    %250 = vmatpush1.msra.mxu0 %v219
    %251 = vmatprep.subr.mxu0 0.0
    %252 = vmatpush1.msra.mxu0 %v220
    %253 = vmatprep.subr.mxu0 0.0
    %254 = vmatpush1.msra.mxu0 %v221
    %255 = vmatprep.subr.mxu0 0.0
    %256 = vmatpush1.msra.mxu0 %v222
    %257 = vmatprep.subr.mxu0 0.0
    %258 = vmatpush1.msra.mxu0 %v223
    %259 = vmatprep.subr.mxu0 0.0
    %260 = vmatpush1.msra.mxu0 %v224
    %261 = vmatprep.subr.mxu0 0.0
    %262 = vmatpush1.msra.mxu0 %v225
    %263 = vmatprep.subr.mxu0 0.0
    %264 = vmatpush1.msra.mxu0 %v226
    %265 = vmatprep.subr.mxu0 0.0
    %266 = vmatpush1.msra.mxu0 %v227
    %267 = vmatprep.subr.mxu0 0.0
    %268 = vmatpush1.msra.mxu0 0.0
    %269 = vmatprep.subr.mxu0 0.0
    %270 = vmatpush1.msra.mxu0 0.0
    %271 = vmatprep.subr.mxu0 0.0
    %272 = vmatpush1.msra.mxu0 0.0
    %273 = vmatprep.subr.mxu0 0.0
    %274 = vmatpush1.msra.mxu0 0.0
    %275 = vmatprep.subr.mxu0 0.0
    %276 = vmatpush1.msra.mxu0 0.0
    %277 = vmatprep.subr.mxu0 0.0
    %278 = vmatpush1.msra.mxu0 0.0
    %279 = vmatprep.subr.mxu0 0.0
    %280 = vmatpush1.msra.mxu0 0.0
    %281 = vmatprep.subr.mxu0 0.0
    %282 = vmatpush1.msra.mxu0 0.0
    %283 = vmatprep.subr.mxu0 0.0
    %284 = vmatpush1.msra.mxu0 0.0
    %285 = vmatprep.subr.mxu0 0.0
    %286 = vmatpush1.msra.mxu0 0.0
    %287 = vmatprep.subr.mxu0 0.0
    %288 = vmatpush1.msra.mxu0 0.0
    %289 = vmatprep.subr.mxu0 0.0
    %290 = vmatpush1.msra.mxu0 0.0
    %291 = vmatprep.subr.mxu0 0.0
    %292 = vmatpush1.msra.mxu0 0.0
    %293 = vmatprep.subr.mxu0 0.0
    %294 = vmatpush1.msra.mxu0 0.0
    %295 = vmatprep.subr.mxu0 0.0
    %296 = vmatpush1.msra.mxu0 0.0
    %297 = vmatprep.subr.mxu0 0.0
    %298 = vmatpush1.msra.mxu0 0.0
    %299 = vmatprep.mubr.f32.mxu0 0.0
    %300 = vmatmul.mubr.f32.gmra.mrb[0].mxu0 %v211
    %v301 = vpop.f32.mrb[0].mxu0
    %v302 = vadd.f32 %v233, %v301
    %v303 = vpop.f32.mrb[0].mxu0
    %304 = vdwg.mxu0
    %v305 = vmax.f32 %v302, 0.0
    %s306 = scalar_lea.vmem [#allocation9], 128
    %v307 = vld [vmem:[%s306] sm:$0xff]
    %v308 = vld [vmem:[%s306 + $0x8] sm:$0xff]
    %v309 = vld [vmem:[%s306 + $0x10] sm:$0xff]
    %v310 = vld [vmem:[%s306 + $0x18] sm:$0xff]
    %v311 = vld [vmem:[%s306 + $0x20] sm:$0xff]
    %v312 = vld [vmem:[%s306 + $0x28] sm:$0xff]
    %v313 = vld [vmem:[%s306 + $0x30] sm:$0xff]
    %v314 = vld [vmem:[%s306 + $0x38] sm:$0xff]
    %v315 = vld [vmem:[%s306 + $0x40] sm:$0xff]
    %v316 = vld [vmem:[%s306 + $0x48] sm:$0xff]
    %v317 = vld [vmem:[%s306 + $0x50] sm:$0xff]
    %v318 = vld [vmem:[%s306 + $0x58] sm:$0xff]
    %v319 = vld [vmem:[%s306 + $0x60] sm:$0xff]
    %v320 = vld [vmem:[%s306 + $0x68] sm:$0xff]
    %v321 = vld [vmem:[%s306 + $0x70] sm:$0xff]
    %v322 = vld [vmem:[%s306 + $0x78] sm:$0xff]
    %s323 = scalar_lea.vmem %s5, 1
    %v324 = vld [vmem:[%s323] sm:$0x1]
    %v326 = vlaneseq
    %v327 = vshrl.u32 %v326, 7
    %v328 = vsub.s32 0, %v327
    %v329 = vrot.slane %v324, %v328
    %331 = vmatprep.subr.mxu0 0.0
    %332 = vmatpush1.msra.mxu0 %v307
    %333 = vmatprep.subr.mxu0 0.0
    %334 = vmatpush1.msra.mxu0 %v308
    %335 = vmatprep.subr.mxu0 0.0
    %336 = vmatpush1.msra.mxu0 %v309
    %337 = vmatprep.subr.mxu0 0.0
    %338 = vmatpush1.msra.mxu0 %v310
    %339 = vmatprep.subr.mxu0 0.0
    %340 = vmatpush1.msra.mxu0 %v311
    %341 = vmatprep.subr.mxu0 0.0
    %342 = vmatpush1.msra.mxu0 %v312
    %343 = vmatprep.subr.mxu0 0.0
    %344 = vmatpush1.msra.mxu0 %v313
    %345 = vmatprep.subr.mxu0 0.0
    %346 = vmatpush1.msra.mxu0 %v314
    %347 = vmatprep.subr.mxu0 0.0
    %348 = vmatpush1.msra.mxu0 %v315
    %349 = vmatprep.subr.mxu0 0.0
    %350 = vmatpush1.msra.mxu0 %v316
    %351 = vmatprep.subr.mxu0 0.0
    %352 = vmatpush1.msra.mxu0 %v317
    %353 = vmatprep.subr.mxu0 0.0
    %354 = vmatpush1.msra.mxu0 %v318
    %355 = vmatprep.subr.mxu0 0.0
    %356 = vmatpush1.msra.mxu0 %v319
    %357 = vmatprep.subr.mxu0 0.0
    %358 = vmatpush1.msra.mxu0 %v320
    %359 = vmatprep.subr.mxu0 0.0
    %360 = vmatpush1.msra.mxu0 %v321
    %361 = vmatprep.subr.mxu0 0.0
    %362 = vmatpush1.msra.mxu0 %v322
    %363 = vmatprep.subr.mxu0 0.0
    %364 = vmatpush1.msra.mxu0 0.0
    %365 = vmatprep.subr.mxu0 0.0
    %366 = vmatpush1.msra.mxu0 0.0
    %367 = vmatprep.subr.mxu0 0.0
    %368 = vmatpush1.msra.mxu0 0.0
    %369 = vmatprep.subr.mxu0 0.0
    %370 = vmatpush1.msra.mxu0 0.0
    %371 = vmatprep.subr.mxu0 0.0
    %372 = vmatpush1.msra.mxu0 0.0
    %373 = vmatprep.subr.mxu0 0.0
    %374 = vmatpush1.msra.mxu0 0.0
    %375 = vmatprep.subr.mxu0 0.0
    %376 = vmatpush1.msra.mxu0 0.0
    %377 = vmatprep.subr.mxu0 0.0
    %378 = vmatpush1.msra.mxu0 0.0
    %379 = vmatprep.subr.mxu0 0.0
    %380 = vmatpush1.msra.mxu0 0.0
    %381 = vmatprep.subr.mxu0 0.0
    %382 = vmatpush1.msra.mxu0 0.0
    %383 = vmatprep.subr.mxu0 0.0
    %384 = vmatpush1.msra.mxu0 0.0
    %385 = vmatprep.subr.mxu0 0.0
    %386 = vmatpush1.msra.mxu0 0.0
    %387 = vmatprep.subr.mxu0 0.0
    %388 = vmatpush1.msra.mxu0 0.0
    %389 = vmatprep.subr.mxu0 0.0
    %390 = vmatpush1.msra.mxu0 0.0
    %391 = vmatprep.subr.mxu0 0.0
    %392 = vmatpush1.msra.mxu0 0.0
    %393 = vmatprep.subr.mxu0 0.0
    %394 = vmatpush1.msra.mxu0 0.0
    %395 = vmatprep.mubr.f32.mxu0 0.0
    %396 = vmatmul.mubr.f32.gmra.mrb[0].mxu0 %v305
    %v397 = vpop.f32.mrb[0].mxu0
    %v398 = vadd.f32 %v329, %v397
    %v399 = vpop.f32.mrb[0].mxu0
    %400 = vdwg.mxu0
    %v401 = vmax.f32 %v398, 0.0
    %s402 = scalar_lea.vmem [#allocation9], 256
    %v403 = vld [vmem:[%s402] sm:$0xff]
    %v404 = vld [vmem:[%s402 + $0x8] sm:$0xff]
    %v405 = vld [vmem:[%s402 + $0x10] sm:$0xff]
    %v406 = vld [vmem:[%s402 + $0x18] sm:$0xff]
    %v407 = vld [vmem:[%s402 + $0x20] sm:$0xff]
    %v408 = vld [vmem:[%s402 + $0x28] sm:$0xff]
    %v409 = vld [vmem:[%s402 + $0x30] sm:$0xff]
    %v410 = vld [vmem:[%s402 + $0x38] sm:$0xff]
    %v411 = vld [vmem:[%s402 + $0x40] sm:$0xff]
    %v412 = vld [vmem:[%s402 + $0x48] sm:$0xff]
    %v413 = vld [vmem:[%s402 + $0x50] sm:$0xff]
    %v414 = vld [vmem:[%s402 + $0x58] sm:$0xff]
    %v415 = vld [vmem:[%s402 + $0x60] sm:$0xff]
    %v416 = vld [vmem:[%s402 + $0x68] sm:$0xff]
    %v417 = vld [vmem:[%s402 + $0x70] sm:$0xff]
    %v418 = vld [vmem:[%s402 + $0x78] sm:$0xff]
    %s419 = scalar_lea.vmem %s5, 2
    %v420 = vld [vmem:[%s419] sm:$0x1]
    %v422 = vlaneseq
    %v423 = vshrl.u32 %v422, 7
    %v424 = vsub.s32 0, %v423
    %v425 = vrot.slane %v420, %v424
    %427 = vmatprep.subr.mxu0 0.0
    %428 = vmatpush1.msra.mxu0 %v403
    %429 = vmatprep.subr.mxu0 0.0
    %430 = vmatpush1.msra.mxu0 %v404
    %431 = vmatprep.subr.mxu0 0.0
    %432 = vmatpush1.msra.mxu0 %v405
    %433 = vmatprep.subr.mxu0 0.0
    %434 = vmatpush1.msra.mxu0 %v406
    %435 = vmatprep.subr.mxu0 0.0
    %436 = vmatpush1.msra.mxu0 %v407
    %437 = vmatprep.subr.mxu0 0.0
    %438 = vmatpush1.msra.mxu0 %v408
    %439 = vmatprep.subr.mxu0 0.0
    %440 = vmatpush1.msra.mxu0 %v409
    %441 = vmatprep.subr.mxu0 0.0
    %442 = vmatpush1.msra.mxu0 %v410
    %443 = vmatprep.subr.mxu0 0.0
    %444 = vmatpush1.msra.mxu0 %v411
    %445 = vmatprep.subr.mxu0 0.0
    %446 = vmatpush1.msra.mxu0 %v412
    %447 = vmatprep.subr.mxu0 0.0
    %448 = vmatpush1.msra.mxu0 %v413
    %449 = vmatprep.subr.mxu0 0.0
    %450 = vmatpush1.msra.mxu0 %v414
    %451 = vmatprep.subr.mxu0 0.0
    %452 = vmatpush1.msra.mxu0 %v415
    %453 = vmatprep.subr.mxu0 0.0
    %454 = vmatpush1.msra.mxu0 %v416
    %455 = vmatprep.subr.mxu0 0.0
    %456 = vmatpush1.msra.mxu0 %v417
    %457 = vmatprep.subr.mxu0 0.0
    %458 = vmatpush1.msra.mxu0 %v418
    %459 = vmatprep.subr.mxu0 0.0
    %460 = vmatpush1.msra.mxu0 0.0
    %461 = vmatprep.subr.mxu0 0.0
    %462 = vmatpush1.msra.mxu0 0.0
    %463 = vmatprep.subr.mxu0 0.0
    %464 = vmatpush1.msra.mxu0 0.0
    %465 = vmatprep.subr.mxu0 0.0
    %466 = vmatpush1.msra.mxu0 0.0
    %467 = vmatprep.subr.mxu0 0.0
    %468 = vmatpush1.msra.mxu0 0.0
    %469 = vmatprep.subr.mxu0 0.0
    %470 = vmatpush1.msra.mxu0 0.0
    %471 = vmatprep.subr.mxu0 0.0
    %472 = vmatpush1.msra.mxu0 0.0
    %473 = vmatprep.subr.mxu0 0.0
    %474 = vmatpush1.msra.mxu0 0.0
    %475 = vmatprep.subr.mxu0 0.0
    %476 = vmatpush1.msra.mxu0 0.0
    %477 = vmatprep.subr.mxu0 0.0
    %478 = vmatpush1.msra.mxu0 0.0
    %479 = vmatprep.subr.mxu0 0.0
    %480 = vmatpush1.msra.mxu0 0.0
    %481 = vmatprep.subr.mxu0 0.0
    %482 = vmatpush1.msra.mxu0 0.0
    %483 = vmatprep.subr.mxu0 0.0
    %484 = vmatpush1.msra.mxu0 0.0
    %485 = vmatprep.subr.mxu0 0.0
    %486 = vmatpush1.msra.mxu0 0.0
    %487 = vmatprep.subr.mxu0 0.0
    %488 = vmatpush1.msra.mxu0 0.0
    %489 = vmatprep.subr.mxu0 0.0
    %490 = vmatpush1.msra.mxu0 0.0
    %491 = vmatprep.mubr.f32.mxu0 0.0
    %492 = vmatmul.mubr.f32.gmra.mrb[0].mxu0 %v401
    %v493 = vpop.f32.mrb[0].mxu0
    %v494 = vadd.f32 %v425, %v493
    %v495 = vpop.f32.mrb[0].mxu0
    %496 = vdwg.mxu0
    %v497 = vld [vmem:[#allocation11] sm:$0xff]
    %v498 = vld [vmem:[#allocation11 + $0x8] sm:$0xff]
    %v499 = vld [vmem:[#allocation11 + $0x10] sm:$0xff]
    %v500 = vld [vmem:[#allocation11 + $0x18] sm:$0xff]
    %v501 = vld [vmem:[#allocation11 + $0x20] sm:$0xff]
    %v502 = vld [vmem:[#allocation11 + $0x28] sm:$0xff]
    %v503 = vld [vmem:[#allocation11 + $0x30] sm:$0xff]
    %v504 = vld [vmem:[#allocation11 + $0x38] sm:$0xff]
    %v505 = vld [vmem:[#allocation11 + $0x40] sm:$0xff]
    %v506 = vld [vmem:[#allocation11 + $0x48] sm:$0xff]
    %v507 = vld [vmem:[#allocation11 + $0x50] sm:$0xff]
    %v508 = vld [vmem:[#allocation11 + $0x58] sm:$0xff]
    %v509 = vld [vmem:[#allocation11 + $0x60] sm:$0xff]
    %v510 = vld [vmem:[#allocation11 + $0x68] sm:$0xff]
    %v511 = vld [vmem:[#allocation11 + $0x70] sm:$0xff]
    %v512 = vld [vmem:[#allocation11 + $0x78] sm:$0xff]
    %v513 = vld [vmem:[#allocation11 + $0x80] sm:$0xff]
    %v514 = vld [vmem:[#allocation11 + $0x88] sm:$0xff]
    %v515 = vld [vmem:[#allocation11 + $0x90] sm:$0xff]
    %v516 = vld [vmem:[#allocation11 + $0x98] sm:$0xff]
    %v517 = vld [vmem:[#allocation11 + $0xa0] sm:$0xff]
    %v518 = vld [vmem:[#allocation11 + $0xa8] sm:$0xff]
    %v519 = vld [vmem:[#allocation11 + $0xb0] sm:$0xff]
    %v520 = vld [vmem:[#allocation11 + $0xb8] sm:$0xff]
    %v521 = vld [vmem:[#allocation11 + $0xc0] sm:$0xff]
    %v522 = vld [vmem:[#allocation11 + $0xc8] sm:$0xff]
    %v523 = vld [vmem:[#allocation11 + $0xd0] sm:$0xff]
    %v524 = vld [vmem:[#allocation11 + $0xd8] sm:$0xff]
    %v525 = vld [vmem:[#allocation11 + $0xe0] sm:$0xff]
    %v526 = vld [vmem:[#allocation11 + $0xe8] sm:$0xff]
    %v527 = vld [vmem:[#allocation11 + $0xf0] sm:$0xff]
    %v528 = vld [vmem:[#allocation11 + $0xf8] sm:$0xff]
    %v529 = vld [vmem:[#allocation11 + $0x100] sm:$0xff]
    %v530 = vld [vmem:[#allocation11 + $0x108] sm:$0xff]
    %v531 = vld [vmem:[#allocation11 + $0x110] sm:$0xff]
    %v532 = vld [vmem:[#allocation11 + $0x118] sm:$0xff]
    %v533 = vld [vmem:[#allocation11 + $0x120] sm:$0xff]
    %v534 = vld [vmem:[#allocation11 + $0x128] sm:$0xff]
    %v535 = vld [vmem:[#allocation11 + $0x130] sm:$0xff]
    %v536 = vld [vmem:[#allocation11 + $0x138] sm:$0xff]
    %v537 = vld [vmem:[#allocation11 + $0x140] sm:$0xff]
    %v538 = vld [vmem:[#allocation11 + $0x148] sm:$0xff]
    %v539 = vld [vmem:[#allocation11 + $0x150] sm:$0xff]
    %v540 = vld [vmem:[#allocation11 + $0x158] sm:$0xff]
    %v541 = vld [vmem:[#allocation11 + $0x160] sm:$0xff]
    %v542 = vld [vmem:[#allocation11 + $0x168] sm:$0xff]
    %v543 = vld [vmem:[#allocation11 + $0x170] sm:$0xff]
    %v544 = vld [vmem:[#allocation11 + $0x178] sm:$0xff]
    %v545 = vld [vmem:[%s7] sm:$0x7]
    %v547 = vlaneseq
    %v548 = vshrl.u32 %v547, 7
    %v549 = vsub.s32 0, %v548
    %v550 = vrot.slane %v545, %v549
    %v551 = vlaneseq
    %v552 = vshrl.u32 %v551, 7
    %v553 = vsub.s32 1, %v552
    %v554 = vrot.slane %v545, %v553
    %v555 = vlaneseq
    %v556 = vshrl.u32 %v555, 7
    %v557 = vsub.s32 2, %v556
    %v558 = vrot.slane %v545, %v557
    %562 = vmatprep.subr.mxu0 %v498
    %563 = vmatpush1.msra.mxu0 %v497
    %564 = vmatprep.subr.mxu0 %v501
    %565 = vmatpush1.msra.mxu0 %v500
    %566 = vmatprep.subr.mxu0 %v504
    %567 = vmatpush1.msra.mxu0 %v503
    %568 = vmatprep.subr.mxu0 %v507
    %569 = vmatpush1.msra.mxu0 %v506
    %570 = vmatprep.subr.mxu0 %v510
    %571 = vmatpush1.msra.mxu0 %v509
    %572 = vmatprep.subr.mxu0 %v513
    %573 = vmatpush1.msra.mxu0 %v512
    %574 = vmatprep.subr.mxu0 %v516
    %575 = vmatpush1.msra.mxu0 %v515
    %576 = vmatprep.subr.mxu0 %v519
    %577 = vmatpush1.msra.mxu0 %v518
    %578 = vmatprep.subr.mxu0 %v522
    %579 = vmatpush1.msra.mxu0 %v521
    %580 = vmatprep.subr.mxu0 %v525
    %581 = vmatpush1.msra.mxu0 %v524
    %582 = vmatprep.subr.mxu0 %v528
    %583 = vmatpush1.msra.mxu0 %v527
    %584 = vmatprep.subr.mxu0 %v531
    %585 = vmatpush1.msra.mxu0 %v530
    %586 = vmatprep.subr.mxu0 %v534
    %587 = vmatpush1.msra.mxu0 %v533
    %588 = vmatprep.subr.mxu0 %v537
    %589 = vmatpush1.msra.mxu0 %v536
    %590 = vmatprep.subr.mxu0 %v540
    %591 = vmatpush1.msra.mxu0 %v539
    %592 = vmatprep.subr.mxu0 %v543
    %593 = vmatpush1.msra.mxu0 %v542
    %594 = vmatprep.subr.mxu0 0.0
    %595 = vmatpush1.msra.mxu0 0.0
    %596 = vmatprep.subr.mxu0 0.0
    %597 = vmatpush1.msra.mxu0 0.0
    %598 = vmatprep.subr.mxu0 0.0
    %599 = vmatpush1.msra.mxu0 0.0
    %600 = vmatprep.subr.mxu0 0.0
    %601 = vmatpush1.msra.mxu0 0.0
    %602 = vmatprep.subr.mxu0 0.0
    %603 = vmatpush1.msra.mxu0 0.0
    %604 = vmatprep.subr.mxu0 0.0
    %605 = vmatpush1.msra.mxu0 0.0
    %606 = vmatprep.subr.mxu0 0.0
    %607 = vmatpush1.msra.mxu0 0.0
    %608 = vmatprep.subr.mxu0 0.0
    %609 = vmatpush1.msra.mxu0 0.0
    %610 = vmatprep.subr.mxu0 0.0
    %611 = vmatpush1.msra.mxu0 0.0
    %612 = vmatprep.subr.mxu0 0.0
    %613 = vmatpush1.msra.mxu0 0.0
    %614 = vmatprep.subr.mxu0 0.0
    %615 = vmatpush1.msra.mxu0 0.0
    %616 = vmatprep.subr.mxu0 0.0
    %617 = vmatpush1.msra.mxu0 0.0
    %618 = vmatprep.subr.mxu0 0.0
    %619 = vmatpush1.msra.mxu0 0.0
    %620 = vmatprep.subr.mxu0 0.0
    %621 = vmatpush1.msra.mxu0 0.0
    %622 = vmatprep.subr.mxu0 0.0
    %623 = vmatpush1.msra.mxu0 0.0
    %624 = vmatprep.subr.mxu0 0.0
    %625 = vmatpush1.msra.mxu0 0.0
    %626 = vmatprep.mubr.f32.mxu0 0.0
    %627 = vmatmul.mubr.f32.gmra.mrb[0].mxu0 %v494
    %v628 = vpop.f32.mrb[0].mxu0
    %v629 = vadd.f32 %v550, %v628
    %v630 = vpop.f32.mrb[0].mxu0
    %v631 = vadd.f32 %v554, %v630
    %632 = vdwg.mxu0
    %633 = vmatprep.subr.mxu0 0.0
    %634 = vmatpush1.msra.mxu0 %v499
    %635 = vmatprep.subr.mxu0 0.0
    %636 = vmatpush1.msra.mxu0 %v502
    %637 = vmatprep.subr.mxu0 0.0
    %638 = vmatpush1.msra.mxu0 %v505
    %639 = vmatprep.subr.mxu0 0.0
    %640 = vmatpush1.msra.mxu0 %v508
    %641 = vmatprep.subr.mxu0 0.0
    %642 = vmatpush1.msra.mxu0 %v511
    %643 = vmatprep.subr.mxu0 0.0
    %644 = vmatpush1.msra.mxu0 %v514
    %645 = vmatprep.subr.mxu0 0.0
    %646 = vmatpush1.msra.mxu0 %v517
    %647 = vmatprep.subr.mxu0 0.0
    %648 = vmatpush1.msra.mxu0 %v520
    %649 = vmatprep.subr.mxu0 0.0
    %650 = vmatpush1.msra.mxu0 %v523
    %651 = vmatprep.subr.mxu0 0.0
    %652 = vmatpush1.msra.mxu0 %v526
    %653 = vmatprep.subr.mxu0 0.0
    %654 = vmatpush1.msra.mxu0 %v529
    %655 = vmatprep.subr.mxu0 0.0
    %656 = vmatpush1.msra.mxu0 %v532
    %657 = vmatprep.subr.mxu0 0.0
    %658 = vmatpush1.msra.mxu0 %v535
    %659 = vmatprep.subr.mxu0 0.0
    %660 = vmatpush1.msra.mxu0 %v538
    %661 = vmatprep.subr.mxu0 0.0
    %662 = vmatpush1.msra.mxu0 %v541
    %663 = vmatprep.subr.mxu0 0.0
    %664 = vmatpush1.msra.mxu0 %v544
    %665 = vmatprep.subr.mxu0 0.0
    %666 = vmatpush1.msra.mxu0 0.0
    %667 = vmatprep.subr.mxu0 0.0
    %668 = vmatpush1.msra.mxu0 0.0
    %669 = vmatprep.subr.mxu0 0.0
    %670 = vmatpush1.msra.mxu0 0.0
    %671 = vmatprep.subr.mxu0 0.0
    %672 = vmatpush1.msra.mxu0 0.0
    %673 = vmatprep.subr.mxu0 0.0
    %674 = vmatpush1.msra.mxu0 0.0
    %675 = vmatprep.subr.mxu0 0.0
    %676 = vmatpush1.msra.mxu0 0.0
    %677 = vmatprep.subr.mxu0 0.0
    %678 = vmatpush1.msra.mxu0 0.0
    %679 = vmatprep.subr.mxu0 0.0
    %680 = vmatpush1.msra.mxu0 0.0
    %681 = vmatprep.subr.mxu0 0.0
    %682 = vmatpush1.msra.mxu0 0.0
    %683 = vmatprep.subr.mxu0 0.0
    %684 = vmatpush1.msra.mxu0 0.0
    %685 = vmatprep.subr.mxu0 0.0
    %686 = vmatpush1.msra.mxu0 0.0
    %687 = vmatprep.subr.mxu0 0.0
    %688 = vmatpush1.msra.mxu0 0.0
    %689 = vmatprep.subr.mxu0 0.0
    %690 = vmatpush1.msra.mxu0 0.0
    %691 = vmatprep.subr.mxu0 0.0
    %692 = vmatpush1.msra.mxu0 0.0
    %693 = vmatprep.subr.mxu0 0.0
    %694 = vmatpush1.msra.mxu0 0.0
    %695 = vmatprep.subr.mxu0 0.0
    %696 = vmatpush1.msra.mxu0 0.0
    %697 = vmatprep.mubr.f32.mxu0 0.0
    %698 = vmatmul.mubr.f32.gmra.mrb[0].mxu0 %v494
    %v699 = vpop.f32.mrb[0].mxu0
    %v700 = vadd.f32 %v558, %v699
    %v701 = vpop.f32.mrb[0].mxu0
    %702 = vdwg.mxu0
    %703 = vst [vmem:[#allocation2] sm:$0xff] %v629
    %704 = vst [vmem:[#allocation2 + $0x8] sm:$0xff] %v631
    %705 = vst [vmem:[#allocation2 + $0x10] sm:$0xff] %v700
    %v706 = vlaneseq
    %v707 = vand.u32 %v706, 127
    %v708 = vsub.s32 127, %v707
    %v709 = vld [vmem:[#allocation2] sm:$0xff]
    %v710 = vmax.f32 %v709, 0.0
    %v711 = vld [vmem:[#allocation12] sm:$0xff]
    %v712 = vld [vmem:[#allocation12 + $0x8] sm:$0xff]
    %v713 = vld [vmem:[#allocation12 + $0x10] sm:$0xff]
    %v714 = vld [vmem:[#allocation12 + $0x18] sm:$0xff]
    %v715 = vld [vmem:[#allocation12 + $0x20] sm:$0xff]
    %v716 = vld [vmem:[#allocation12 + $0x28] sm:$0xff]
    %v717 = vld [vmem:[#allocation12 + $0x30] sm:$0xff]
    %v718 = vld [vmem:[#allocation12 + $0x38] sm:$0xff]
    %v719 = vld [vmem:[#allocation12 + $0x40] sm:$0xff]
    %v720 = vld [vmem:[#allocation12 + $0x48] sm:$0xff]
    %v721 = vld [vmem:[#allocation12 + $0x50] sm:$0xff]
    %v722 = vld [vmem:[#allocation12 + $0x58] sm:$0xff]
    %v723 = vld [vmem:[#allocation12 + $0x60] sm:$0xff]
    %v724 = vld [vmem:[#allocation12 + $0x68] sm:$0xff]
    %v725 = vld [vmem:[#allocation12 + $0x70] sm:$0xff]
    %v726 = vld [vmem:[#allocation12 + $0x78] sm:$0xff]
    %v727 = vld [vmem:[%s10] sm:$0x1]
    %v729 = vlaneseq
    %v730 = vshrl.u32 %v729, 7
    %v731 = vsub.s32 0, %v730
    %v732 = vrot.slane %v727, %v731
    %734 = vmatprep.subr.mxu0 0.0
    %735 = vmatpush1.msra.mxu0 %v711
    %736 = vmatprep.subr.mxu0 0.0
    %737 = vmatpush1.msra.mxu0 %v712
    %738 = vmatprep.subr.mxu0 0.0
    %739 = vmatpush1.msra.mxu0 %v713
    %740 = vmatprep.subr.mxu0 0.0
    %741 = vmatpush1.msra.mxu0 %v714
    %742 = vmatprep.subr.mxu0 0.0
    %743 = vmatpush1.msra.mxu0 %v715
    %744 = vmatprep.subr.mxu0 0.0
    %745 = vmatpush1.msra.mxu0 %v716
    %746 = vmatprep.subr.mxu0 0.0
    %747 = vmatpush1.msra.mxu0 %v717
    %748 = vmatprep.subr.mxu0 0.0
    %749 = vmatpush1.msra.mxu0 %v718
    %750 = vmatprep.subr.mxu0 0.0
    %751 = vmatpush1.msra.mxu0 %v719
    %752 = vmatprep.subr.mxu0 0.0
    %753 = vmatpush1.msra.mxu0 %v720
    %754 = vmatprep.subr.mxu0 0.0
    %755 = vmatpush1.msra.mxu0 %v721
    %756 = vmatprep.subr.mxu0 0.0
    %757 = vmatpush1.msra.mxu0 %v722
    %758 = vmatprep.subr.mxu0 0.0
    %759 = vmatpush1.msra.mxu0 %v723
    %760 = vmatprep.subr.mxu0 0.0
    %761 = vmatpush1.msra.mxu0 %v724
    %762 = vmatprep.subr.mxu0 0.0
    %763 = vmatpush1.msra.mxu0 %v725
    %764 = vmatprep.subr.mxu0 0.0
    %765 = vmatpush1.msra.mxu0 %v726
    %766 = vmatprep.subr.mxu0 0.0
    %767 = vmatpush1.msra.mxu0 0.0
    %768 = vmatprep.subr.mxu0 0.0
    %769 = vmatpush1.msra.mxu0 0.0
    %770 = vmatprep.subr.mxu0 0.0
    %771 = vmatpush1.msra.mxu0 0.0
    %772 = vmatprep.subr.mxu0 0.0
    %773 = vmatpush1.msra.mxu0 0.0
    %774 = vmatprep.subr.mxu0 0.0
    %775 = vmatpush1.msra.mxu0 0.0
    %776 = vmatprep.subr.mxu0 0.0
    %777 = vmatpush1.msra.mxu0 0.0
    %778 = vmatprep.subr.mxu0 0.0
    %779 = vmatpush1.msra.mxu0 0.0
    %780 = vmatprep.subr.mxu0 0.0
    %781 = vmatpush1.msra.mxu0 0.0
    %782 = vmatprep.subr.mxu0 0.0
    %783 = vmatpush1.msra.mxu0 0.0
    %784 = vmatprep.subr.mxu0 0.0
    %785 = vmatpush1.msra.mxu0 0.0
    %786 = vmatprep.subr.mxu0 0.0
    %787 = vmatpush1.msra.mxu0 0.0
    %788 = vmatprep.subr.mxu0 0.0
    %789 = vmatpush1.msra.mxu0 0.0
    %790 = vmatprep.subr.mxu0 0.0
    %791 = vmatpush1.msra.mxu0 0.0
    %792 = vmatprep.subr.mxu0 0.0
    %793 = vmatpush1.msra.mxu0 0.0
    %794 = vmatprep.subr.mxu0 0.0
    %795 = vmatpush1.msra.mxu0 0.0
    %796 = vmatprep.subr.mxu0 0.0
    %797 = vmatpush1.msra.mxu0 0.0
    %798 = vmatprep.mubr.f32.mxu0 0.0
    %799 = vmatmul.mubr.f32.gmra.mrb[0].mxu0 %v710
    %v800 = vpop.f32.mrb[0].mxu0
    %v801 = vadd.f32 %v732, %v800
    %v802 = vpop.f32.mrb[0].mxu0
    %803 = vdwg.mxu0
    %v804 = vld [vmem:[#allocation6] sm:$0xff]
    %v805 = vadd.f32 %v801, %v804
    %v807 = vand.u32 %v805, 4294967168
    %v808 = vor.u32 %v807, %v708
    %810 = vmax.xlane.f32.xlu0 %v808
    %v811 = vpop.xlane.xlu0 %810
    %v813 = vand.u32 %v811, 127
    %v814 = vsub.s32 127, %v813
    %v815 = vcvt.s32.f32 %v814
    %v816 = vmul.f32 %v815, 0.025
    %v817 = vadd.f32 %v804, %v816
    %v818 = vld [vmem:[#allocation2 + $0x8] sm:$0xff]
    %v819 = vld [vmem:[%s8] sm:$0xff]
    %821 = vset.pattern.permute.xlu0 80
    %822 = vperm.xlu0 %821, %v817
    %v823 = vpop.permute.xlu0 %822
    %v825 = vlaneseq
    %v826 = vshrl.u32 %v825, 7
    %v827 = vsub.s32 0, %v826
    %v828 = vrot.slane %v819, %v827
    %v829 = vmul.f32 %v823, %v828
    %v830 = vadd.f32 %v818, %v829
    %v831 = vmax.f32 %v830, 0.0
    %s832 = scalar_lea.vmem [#allocation12], 128
    %v833 = vld [vmem:[%s832] sm:$0xff]
    %v834 = vld [vmem:[%s832 + $0x8] sm:$0xff]
    %v835 = vld [vmem:[%s832 + $0x10] sm:$0xff]
    %v836 = vld [vmem:[%s832 + $0x18] sm:$0xff]
    %v837 = vld [vmem:[%s832 + $0x20] sm:$0xff]
    %v838 = vld [vmem:[%s832 + $0x28] sm:$0xff]
    %v839 = vld [vmem:[%s832 + $0x30] sm:$0xff]
    %v840 = vld [vmem:[%s832 + $0x38] sm:$0xff]
    %v841 = vld [vmem:[%s832 + $0x40] sm:$0xff]
    %v842 = vld [vmem:[%s832 + $0x48] sm:$0xff]
    %v843 = vld [vmem:[%s832 + $0x50] sm:$0xff]
    %v844 = vld [vmem:[%s832 + $0x58] sm:$0xff]
    %v845 = vld [vmem:[%s832 + $0x60] sm:$0xff]
    %v846 = vld [vmem:[%s832 + $0x68] sm:$0xff]
    %v847 = vld [vmem:[%s832 + $0x70] sm:$0xff]
    %v848 = vld [vmem:[%s832 + $0x78] sm:$0xff]
    %s849 = scalar_lea.vmem %s10, 1
    %v850 = vld [vmem:[%s849] sm:$0x1]
    %v852 = vlaneseq
    %v853 = vshrl.u32 %v852, 7
    %v854 = vsub.s32 0, %v853
    %v855 = vrot.slane %v850, %v854
    %857 = vmatprep.subr.mxu0 0.0
    %858 = vmatpush1.msra.mxu0 %v833
    %859 = vmatprep.subr.mxu0 0.0
    %860 = vmatpush1.msra.mxu0 %v834
    %861 = vmatprep.subr.mxu0 0.0
    %862 = vmatpush1.msra.mxu0 %v835
    %863 = vmatprep.subr.mxu0 0.0
    %864 = vmatpush1.msra.mxu0 %v836
    %865 = vmatprep.subr.mxu0 0.0
    %866 = vmatpush1.msra.mxu0 %v837
    %867 = vmatprep.subr.mxu0 0.0
    %868 = vmatpush1.msra.mxu0 %v838
    %869 = vmatprep.subr.mxu0 0.0
    %870 = vmatpush1.msra.mxu0 %v839
    %871 = vmatprep.subr.mxu0 0.0
    %872 = vmatpush1.msra.mxu0 %v840
    %873 = vmatprep.subr.mxu0 0.0
    %874 = vmatpush1.msra.mxu0 %v841
    %875 = vmatprep.subr.mxu0 0.0
    %876 = vmatpush1.msra.mxu0 %v842
    %877 = vmatprep.subr.mxu0 0.0
    %878 = vmatpush1.msra.mxu0 %v843
    %879 = vmatprep.subr.mxu0 0.0
    %880 = vmatpush1.msra.mxu0 %v844
    %881 = vmatprep.subr.mxu0 0.0
    %882 = vmatpush1.msra.mxu0 %v845
    %883 = vmatprep.subr.mxu0 0.0
    %884 = vmatpush1.msra.mxu0 %v846
    %885 = vmatprep.subr.mxu0 0.0
    %886 = vmatpush1.msra.mxu0 %v847
    %887 = vmatprep.subr.mxu0 0.0
    %888 = vmatpush1.msra.mxu0 %v848
    %889 = vmatprep.subr.mxu0 0.0
    %890 = vmatpush1.msra.mxu0 0.0
    %891 = vmatprep.subr.mxu0 0.0
    %892 = vmatpush1.msra.mxu0 0.0
    %893 = vmatprep.subr.mxu0 0.0
    %894 = vmatpush1.msra.mxu0 0.0
    %895 = vmatprep.subr.mxu0 0.0
    %896 = vmatpush1.msra.mxu0 0.0
    %897 = vmatprep.subr.mxu0 0.0
    %898 = vmatpush1.msra.mxu0 0.0
    %899 = vmatprep.subr.mxu0 0.0
    %900 = vmatpush1.msra.mxu0 0.0
    %901 = vmatprep.subr.mxu0 0.0
    %902 = vmatpush1.msra.mxu0 0.0
    %903 = vmatprep.subr.mxu0 0.0
    %904 = vmatpush1.msra.mxu0 0.0
    %905 = vmatprep.subr.mxu0 0.0
    %906 = vmatpush1.msra.mxu0 0.0
    %907 = vmatprep.subr.mxu0 0.0
    %908 = vmatpush1.msra.mxu0 0.0
    %909 = vmatprep.subr.mxu0 0.0
    %910 = vmatpush1.msra.mxu0 0.0
    %911 = vmatprep.subr.mxu0 0.0
    %912 = vmatpush1.msra.mxu0 0.0
    %913 = vmatprep.subr.mxu0 0.0
    %914 = vmatpush1.msra.mxu0 0.0
    %915 = vmatprep.subr.mxu0 0.0
    %916 = vmatpush1.msra.mxu0 0.0
    %917 = vmatprep.subr.mxu0 0.0
    %918 = vmatpush1.msra.mxu0 0.0
    %919 = vmatprep.subr.mxu0 0.0
    %920 = vmatpush1.msra.mxu0 0.0
    %921 = vmatprep.mubr.f32.mxu0 0.0
    %922 = vmatmul.mubr.f32.gmra.mrb[0].mxu0 %v831
    %v923 = vpop.f32.mrb[0].mxu0
    %v924 = vadd.f32 %v855, %v923
    %v925 = vpop.f32.mrb[0].mxu0
    %926 = vdwg.mxu0
    %v927 = vld [vmem:[#allocation6 + $0x8] sm:$0xff]
    %v928 = vadd.f32 %v924, %v927
    %v930 = vand.u32 %v928, 4294967168
    %v931 = vor.u32 %v930, %v708
    %933 = vmax.xlane.f32.xlu0 %v931
    %v934 = vpop.xlane.xlu0 %933
    %v936 = vand.u32 %v934, 127
    %v937 = vsub.s32 127, %v936
    %v938 = vcvt.s32.f32 %v937
    %v939 = vmul.f32 %v938, 0.025
    %v940 = vadd.f32 %v927, %v939
    %v941 = vld [vmem:[#allocation2 + $0x10] sm:$0xff]
    %s942 = scalar_lea.vmem %s8, 8
    %v943 = vld [vmem:[%s942] sm:$0xff]
    %v944 = vlaneseq
    %v945 = vshrl.u32 %v944, 7
    %v946 = vsub.s32 0, %v945
    %v947 = vrot.slane %v943, %v946
    %v948 = vmul.f32 %v823, %v947
    %v949 = vadd.f32 %v941, %v948
    %951 = vset.pattern.permute.xlu0 80
    %952 = vperm.xlu0 %951, %v940
    %v953 = vpop.permute.xlu0 %952
    %v955 = vlaneseq
    %v956 = vshrl.u32 %v955, 7
    %v957 = vsub.s32 1, %v956
    %v958 = vrot.slane %v943, %v957
    %v959 = vmul.f32 %v953, %v958
    %v960 = vadd.f32 %v949, %v959
    %v961 = vmax.f32 %v960, 0.0
    %s962 = scalar_lea.vmem [#allocation12], 256
    %v963 = vld [vmem:[%s962] sm:$0xff]
    %v964 = vld [vmem:[%s962 + $0x8] sm:$0xff]
    %v965 = vld [vmem:[%s962 + $0x10] sm:$0xff]
    %v966 = vld [vmem:[%s962 + $0x18] sm:$0xff]
    %v967 = vld [vmem:[%s962 + $0x20] sm:$0xff]
    %v968 = vld [vmem:[%s962 + $0x28] sm:$0xff]
    %v969 = vld [vmem:[%s962 + $0x30] sm:$0xff]
    %v970 = vld [vmem:[%s962 + $0x38] sm:$0xff]
    %v971 = vld [vmem:[%s962 + $0x40] sm:$0xff]
    %v972 = vld [vmem:[%s962 + $0x48] sm:$0xff]
    %v973 = vld [vmem:[%s962 + $0x50] sm:$0xff]
    %v974 = vld [vmem:[%s962 + $0x58] sm:$0xff]
    %v975 = vld [vmem:[%s962 + $0x60] sm:$0xff]
    %v976 = vld [vmem:[%s962 + $0x68] sm:$0xff]
    %v977 = vld [vmem:[%s962 + $0x70] sm:$0xff]
    %v978 = vld [vmem:[%s962 + $0x78] sm:$0xff]
    %s979 = scalar_lea.vmem %s10, 2
    %v980 = vld [vmem:[%s979] sm:$0x1]
    %v982 = vlaneseq
    %v983 = vshrl.u32 %v982, 7
    %v984 = vsub.s32 0, %v983
    %v985 = vrot.slane %v980, %v984
    %987 = vmatprep.subr.mxu0 0.0
    %988 = vmatpush1.msra.mxu0 %v963
    %989 = vmatprep.subr.mxu0 0.0
    %990 = vmatpush1.msra.mxu0 %v964
    %991 = vmatprep.subr.mxu0 0.0
    %992 = vmatpush1.msra.mxu0 %v965
    %993 = vmatprep.subr.mxu0 0.0
    %994 = vmatpush1.msra.mxu0 %v966
    %995 = vmatprep.subr.mxu0 0.0
    %996 = vmatpush1.msra.mxu0 %v967
    %997 = vmatprep.subr.mxu0 0.0
    %998 = vmatpush1.msra.mxu0 %v968
    %999 = vmatprep.subr.mxu0 0.0
    %1000 = vmatpush1.msra.mxu0 %v969
    %1001 = vmatprep.subr.mxu0 0.0
    %1002 = vmatpush1.msra.mxu0 %v970
    %1003 = vmatprep.subr.mxu0 0.0
    %1004 = vmatpush1.msra.mxu0 %v971
    %1005 = vmatprep.subr.mxu0 0.0
    %1006 = vmatpush1.msra.mxu0 %v972
    %1007 = vmatprep.subr.mxu0 0.0
    %1008 = vmatpush1.msra.mxu0 %v973
    %1009 = vmatprep.subr.mxu0 0.0
    %1010 = vmatpush1.msra.mxu0 %v974
    %1011 = vmatprep.subr.mxu0 0.0
    %1012 = vmatpush1.msra.mxu0 %v975
    %1013 = vmatprep.subr.mxu0 0.0
    %1014 = vmatpush1.msra.mxu0 %v976
    %1015 = vmatprep.subr.mxu0 0.0
    %1016 = vmatpush1.msra.mxu0 %v977
    %1017 = vmatprep.subr.mxu0 0.0
    %1018 = vmatpush1.msra.mxu0 %v978
    %1019 = vmatprep.subr.mxu0 0.0
    %1020 = vmatpush1.msra.mxu0 0.0
    %1021 = vmatprep.subr.mxu0 0.0
    %1022 = vmatpush1.msra.mxu0 0.0
    %1023 = vmatprep.subr.mxu0 0.0
    %1024 = vmatpush1.msra.mxu0 0.0
    %1025 = vmatprep.subr.mxu0 0.0
    %1026 = vmatpush1.msra.mxu0 0.0
    %1027 = vmatprep.subr.mxu0 0.0
    %1028 = vmatpush1.msra.mxu0 0.0
    %1029 = vmatprep.subr.mxu0 0.0
    %1030 = vmatpush1.msra.mxu0 0.0
    %1031 = vmatprep.subr.mxu0 0.0
    %1032 = vmatpush1.msra.mxu0 0.0
    %1033 = vmatprep.subr.mxu0 0.0
    %1034 = vmatpush1.msra.mxu0 0.0
    %1035 = vmatprep.subr.mxu0 0.0
    %1036 = vmatpush1.msra.mxu0 0.0
    %1037 = vmatprep.subr.mxu0 0.0
    %1038 = vmatpush1.msra.mxu0 0.0
    %1039 = vmatprep.subr.mxu0 0.0
    %1040 = vmatpush1.msra.mxu0 0.0
    %1041 = vmatprep.subr.mxu0 0.0
    %1042 = vmatpush1.msra.mxu0 0.0
    %1043 = vmatprep.subr.mxu0 0.0
    %1044 = vmatpush1.msra.mxu0 0.0
    %1045 = vmatprep.subr.mxu0 0.0
    %1046 = vmatpush1.msra.mxu0 0.0
    %1047 = vmatprep.subr.mxu0 0.0
    %1048 = vmatpush1.msra.mxu0 0.0
    %1049 = vmatprep.subr.mxu0 0.0
    %1050 = vmatpush1.msra.mxu0 0.0
    %1051 = vmatprep.mubr.f32.mxu0 0.0
    %1052 = vmatmul.mubr.f32.gmra.mrb[0].mxu0 %v961
    %v1053 = vpop.f32.mrb[0].mxu0
    %v1054 = vadd.f32 %v985, %v1053
    %v1055 = vpop.f32.mrb[0].mxu0
    %1056 = vdwg.mxu0
    %v1057 = vld [vmem:[#allocation6 + $0x10] sm:$0xff]
    %v1058 = vadd.f32 %v1054, %v1057
    %v1060 = vand.u32 %v1058, 4294967168
    %v1061 = vor.u32 %v1060, %v708
    %1063 = vmax.xlane.f32.xlu0 %v1061
    %v1064 = vpop.xlane.xlu0 %1063
    %v1066 = vand.u32 %v1064, 127
    %v1067 = vsub.s32 127, %v1066
    %v1068 = vcvt.s32.f32 %v1067
    %v1069 = vmul.f32 %v1068, 0.025
    %v1070 = vadd.f32 %v1057, %v1069
    %vm1071 = vcmp.eq.s32.totalorder %v707, 0
    %v1072 = vsel %vm1071, %v823, 0.0
    %vm1073 = vcmp.eq.s32.totalorder %v707, 1
    %v1074 = vsel %vm1073, %v953, %v1072
    %vm1075 = vcmp.eq.s32.totalorder %v707, 2
    %1077 = vset.pattern.permute.xlu0 80
    %1078 = vperm.xlu0 %1077, %v1070
    %v1079 = vpop.permute.xlu0 %1078
    %v1081 = vsel %vm1075, %v1079, %v1074
    %1082 = vst [vmem:[#allocation14] sm:$0xff] %v1081
    // Predicated region
    $region70: #{tpu_custom_call.1} parent=1 // pred_check
      _
    $region71: #{tpu_custom_call.1} parent=1 // pred_check_branch
      %1084 = sbr.rel (0) target = $region73
    $region72: #{tpu_custom_call.1} parent=1 // pred_region
      %s1086 = ssub.s32 128, 128
      %1087 = vsyncadd [#allocation5], %s1086
      %s1089 = sshll.u32 [#allocation14], 4
      %s1090 = int_to_ptr.vmem [resolvable:$true] %s1089
      %1092 = dma.vmem_to_hbm [thread:$0]  %s1090, 128, %s11, [#allocation5]
    $region73: #{tpu_custom_call.1} parent=1 // pred_fallthru
      _
    // Predicated region
    $region74: #{tpu_custom_call.1} parent=1 // pred_check
      _
    $region75: #{tpu_custom_call.1} parent=1 // pred_check_branch
      %1094 = sbr.rel (0) target = $region77
    $region76: #{tpu_custom_call.1} parent=1 // pred_region
      %1095 = dma.done [#allocation5], 128
    $region77: #{tpu_custom_call.1} parent=1 // pred_fallthru
      _
    %1096 = vsyncpa [#allocation4], 1
    %1097 = vsyncpa [#allocation7], 1
    %1098 = vsyncpa [#allocation10], 1
    %1099 = vsyncpa [#allocation13], 1
    %1100 = vsyncpa [#allocation5], 1

</llo_original>
